<compile_context>
chip_gen: v7x
topology: tpu7x:2x2x1
jax: 0.10.0
libtpu: 0.0.40
codegen_flags: <defaults>
</compile_context>

<pallas_src>
import functools

import jax
import jax.numpy as jnp
from jax.experimental import pallas as pl
from jax.experimental.pallas import tpu as pltpu


# ----------------------------------------------------------------------------
# Fused Pallas kernel: lin0 -> per-branch GCN stack -> pool -> (concat+lin1)
# accumulate -> relu -> lin2, all in one call.  grid=(num_adjs,), "arbitrary".
# ----------------------------------------------------------------------------
def _fused_kernel(node_ref, w0_ref, b0_ref, a_ref, wc_ref, pool_ref,
                  w1_ref, b1_ref, w2_ref, b2_ref, out_ref,
                  h0_ref, acc_ref, *, num_layers):
    branch = pl.program_id(0)

    # lin0 + relu computed once (first grid step), stashed in VMEM scratch.
    @pl.when(branch == 0)
    def _():
        x = jnp.dot(node_ref[...], w0_ref[...],
                    preferred_element_type=jnp.float32)
        h0_ref[...] = jnp.maximum(x + b0_ref[...], 0.0)        # (N, 128)
        acc_ref[...] = jnp.zeros_like(acc_ref)                 # lin1 accumulator

    h = h0_ref[...]                                            # (N, 128) f32
    a_hat = a_ref[0]                                           # (N, N)  f32
    for layer in range(num_layers):
        # GCNConv (bias=False): A_hat @ (h @ W), then relu
        xw = jnp.dot(h, wc_ref[layer], preferred_element_type=jnp.float32)
        h = jnp.maximum(
            jnp.dot(a_hat, xw, preferred_element_type=jnp.float32), 0.0)

    # global_add_pool as a small matmul with the (padded) one-hot matrix.
    pooled = jnp.dot(pool_ref[...], h,
                     preferred_element_type=jnp.float32)       # (gp, 128)

    # concat + lin1 == sum over branches of pooled[a] @ W1[a*128:(a+1)*128, :]
    acc_ref[...] += jnp.dot(pooled, w1_ref[0],
                            preferred_element_type=jnp.float32)

    @pl.when(branch == pl.num_programs(0) - 1)
    def _():
        y = jnp.maximum(acc_ref[...] + b1_ref[...], 0.0)       # lin1 + relu
        # TODO(synk): F.dropout(p=0.5) is identity at inference (training=False).
        out_ref[...] = (jnp.dot(y, w2_ref[...],
                                preferred_element_type=jnp.float32)
                        + b2_ref[...])                         # (gp, 128) lane-dense


# ----------------------------------------------------------------------------
# pallas_call wrapper
# ----------------------------------------------------------------------------
def run_fused(node, prep, a_hats, pool_pad, *, num_adjs, num_layers):
    n, f_in = node.shape
    f_hid = prep["w0"].shape[1]
    gp = pool_pad.shape[0]
    out_pad = prep["w2p"].shape[1]

    flops = (2 * n * f_in * f_hid
             + num_adjs * (num_layers * 2 * (2 * n * f_hid * f_hid)
                           + 2 * gp * n * f_hid
                           + 2 * gp * f_hid * f_hid)
             + 2 * gp * f_hid * out_pad)
    bytes_accessed = 4 * (node.size + a_hats.size + pool_pad.size
                          + sum(int(v.size) for v in prep.values())
                          + gp * out_pad)

    return pl.pallas_call(
        functools.partial(_fused_kernel, num_layers=num_layers),
        out_shape=jax.ShapeDtypeStruct((gp, out_pad), jnp.float32),
        grid=(num_adjs,),
        in_specs=[
            pl.BlockSpec((n, f_in), lambda a: (0, 0)),                    # node
            pl.BlockSpec((f_in, f_hid), lambda a: (0, 0)),                # lin0 W
            pl.BlockSpec((1, f_hid), lambda a: (0, 0)),                   # lin0 b
            pl.BlockSpec((1, n, n), lambda a: (a, 0, 0)),                 # A_hat[a]
            pl.BlockSpec((num_layers, f_hid, f_hid),
                         lambda a: (a, 0, 0)),                            # conv Ws[a]
            pl.BlockSpec((gp, n), lambda a: (0, 0)),                      # pool
            pl.BlockSpec((1, f_hid, f_hid), lambda a: (a, 0, 0)),         # lin1 W[a]
            pl.BlockSpec((1, f_hid), lambda a: (0, 0)),                   # lin1 b
            pl.BlockSpec((f_hid, out_pad), lambda a: (0, 0)),             # lin2 W (padded)
            pl.BlockSpec((1, out_pad), lambda a: (0, 0)),                 # lin2 b (padded)
        ],
        out_specs=pl.BlockSpec((gp, out_pad), lambda a: (0, 0)),
        scratch_shapes=[
            pltpu.VMEM((n, f_hid), jnp.float32),    # h0 (lin0 output, reused)
            pltpu.VMEM((gp, f_hid), jnp.float32),   # lin1 accumulator
        ],
        compiler_params=pltpu.CompilerParams(
            dimension_semantics=("arbitrary",)),    # serial grid: scratch carries
        cost_estimate=pl.CostEstimate(flops=flops, transcendentals=0,
                                      bytes_accessed=bytes_accessed),
    )(node, prep["w0"], prep["b0"], a_hats, prep["w_convs"], pool_pad,
      prep["w1r"], prep["b1"], prep["w2p"], prep["b2p"])


# ----------------------------------------------------------------------------
# One-time parameter / input preparation (OUTSIDE the hot forward path)
# ----------------------------------------------------------------------------
def prepare_params(params, *, num_adjs, num_layers, out_pad=128):
    f_hid = params["lin0_w"].shape[1]
    w_convs = jnp.stack(
        [w for layer_ws in params["convs"] for w in layer_ws])  # (A*L, 128, 128)
    w2p = jnp.zeros((f_hid, out_pad), jnp.float32).at[:, :1].set(
        params["lin2_w"])
    b2p = jnp.zeros((1, out_pad), jnp.float32).at[:, :1].set(params["lin2_b"])
    return {
        "w0": params["lin0_w"],                                  # (f_in, 128)
        "b0": params["lin0_b"],                                  # (1, 128)
        "w_convs": w_convs,
        "w1r": params["lin1_w"].reshape(num_adjs, f_hid, f_hid), # (A, 128, 128)
        "b1": params["lin1_b"],                                  # (1, 128)
        "w2p": w2p,                                              # (128, 128)
        "b2p": b2p,                                              # (1, 128)
    }


def normalized_adjacency(edge_index, num_nodes):
    # PyG gcn_norm: A_hat = D^{-1/2} (A + I_remaining) D^{-1/2}
    src, dst = edge_index[0], edge_index[1]
    a = jnp.zeros((num_nodes, num_nodes), jnp.float32)
    a = a.at[dst, src].add(1.0)           # message j -> i lands in row i
    diag = jnp.diagonal(a)                # add_remaining_self_loops
    a = a + jnp.diag(jnp.where(diag > 0, 0.0, 1.0))
    deg = a.sum(axis=1)
    d_inv_sqrt = jnp.where(deg > 0, 1.0 / jnp.sqrt(deg), 0.0)
    return d_inv_sqrt[:, None] * a * d_inv_sqrt[None, :]


def prepare_pool(batch, num_graphs):
    # one-hot (G, N): global_add_pool(x, batch) == P @ x, padded to 8 sublanes
    n = batch.shape[0]
    pool = (batch[None, :] == jnp.arange(num_graphs)[:, None]).astype(jnp.float32)
    gp = ((num_graphs + 7) // 8) * 8
    return jnp.zeros((gp, n), jnp.float32).at[:num_graphs].set(pool)


# ----------------------------------------------------------------------------
# Model
# ----------------------------------------------------------------------------
def init_params(key, input_dim, num_adjs=2, num_layers=3):
    keys = iter(jax.random.split(key, 4 + num_adjs * num_layers))

    def w(shape):
        return (jax.random.normal(next(keys), shape, jnp.float32)
                * (1.0 / jnp.sqrt(shape[0])))

    params = {
        "lin0_w": w((input_dim, 128)),
        "lin0_b": jnp.zeros((1, 128), jnp.float32),
        "lin1_w": w((256, 128)),
        "lin1_b": jnp.zeros((1, 128), jnp.float32),
        "lin2_w": w((128, 1)),
        "lin2_b": jnp.zeros((1, 1), jnp.float32),
        "convs": [],
    }
    out_last = 256 // num_adjs
    for _ in range(num_adjs):
        layer_ws = []
        for num in range(num_layers):
            out_dim = out_last if num == num_layers - 1 else 128
            layer_ws.append(w((128, out_dim)))     # GCNConv bias=False
        params["convs"].append(layer_ws)
    return params


@functools.partial(jax.jit,
                   static_argnames=("num_adjs", "num_layers", "num_graphs"))
def gcn_model_forward(prep, node, a_hats, pool_pad, *, num_adjs=2,
                      num_layers=3, num_graphs=1):
    # fused kernel assumes concat width 256 split evenly into 128-wide branches
    assert 256 // num_adjs == prep["w0"].shape[1], "requires num_adjs == 2"
    out_slab = run_fused(node, prep, a_hats, pool_pad,
                         num_adjs=num_adjs, num_layers=num_layers)  # (gp, 128)
    return out_slab[:num_graphs, :1]                                # (G, 1)


# ----------------------------------------------------------------------------
# Driver
# ----------------------------------------------------------------------------
if __name__ == "__main__":
    INPUT_DIM = 16
    NUM_NODES = 32
    NUM_GRAPHS = 4
    NUM_EDGES = 64
    NUM_ADJS = 2
    NUM_LAYERS = 3

    root = jax.random.PRNGKey(0)
    k_feat, k_edges, k_params = jax.random.split(root, 3)

    # node features (N, input_dim)
    node = jax.random.normal(k_feat, (NUM_NODES, INPUT_DIM), jnp.float32)

    # one edge set per adjacency (data.edge_index[adj]), shape (2, E) int32
    edge_keys = jax.random.split(k_edges, NUM_ADJS)
    a_hats = jnp.stack([
        normalized_adjacency(
            jax.random.randint(edge_keys[adj], (2, NUM_EDGES), 0, NUM_NODES,
                               dtype=jnp.int32),
            NUM_NODES)
        for adj in range(NUM_ADJS)
    ])                                                # (NUM_ADJS, N, N) f32

    # batch assignment: NUM_GRAPHS graphs of equal size, contiguous nodes
    batch = jnp.repeat(jnp.arange(NUM_GRAPHS, dtype=jnp.int32),
                       NUM_NODES // NUM_GRAPHS)
    pool_pad = prepare_pool(batch, NUM_GRAPHS)        # (8, N) f32, padded

    params = init_params(k_params, INPUT_DIM, num_adjs=NUM_ADJS,
                         num_layers=NUM_LAYERS)
    prep = prepare_params(params, num_adjs=NUM_ADJS, num_layers=NUM_LAYERS)
    prep = jax.tree_util.tree_map(jax.device_put, prep)   # one-time, off hot path

    out = gcn_model_forward(prep, node, a_hats, pool_pad,
                            num_adjs=NUM_ADJS, num_layers=NUM_LAYERS,
                            num_graphs=NUM_GRAPHS)
    out = jax.block_until_ready(out)

    assert out.shape == (NUM_GRAPHS, 1), out.shape
    print("KERNEL_OK")
</pallas_src>

<mosaic_0001>
module attributes {stable_mosaic.version = 11 : i64} {
  func.func @_fused_kernel(%arg0: i32, %arg1: memref<32x16xf32, #tpu.memory_space<vmem>>, %arg2: memref<16x128xf32, #tpu.memory_space<vmem>>, %arg3: memref<1x128xf32, #tpu.memory_space<vmem>>, %arg4: memref<1x32x32xf32, #tpu.memory_space<vmem>>, %arg5: memref<3x128x128xf32, #tpu.memory_space<vmem>>, %arg6: memref<8x32xf32, #tpu.memory_space<vmem>>, %arg7: memref<1x128x128xf32, #tpu.memory_space<vmem>>, %arg8: memref<1x128xf32, #tpu.memory_space<vmem>>, %arg9: memref<128x128xf32, #tpu.memory_space<vmem>>, %arg10: memref<1x128xf32, #tpu.memory_space<vmem>>, %arg11: memref<8x128xf32, #tpu.memory_space<vmem>>, %arg12: memref<32x128xf32, #tpu.memory_space<vmem>>, %arg13: memref<8x128xf32, #tpu.memory_space<vmem>>) attributes {dimension_semantics = [#tpu.dimension_semantics<arbitrary>], iteration_bounds = array<i64: 2>, scalar_prefetch = 0 : i64, scratch_operands = 2 : i64, tpu.core_type = #tpu.core_type<tc>, window_params = [{pipeline_mode = #tpu.pipeline_mode<synchronous>, transform_indices = @transform_0, window_bounds = array<i64: 32, 16>}, {pipeline_mode = #tpu.pipeline_mode<synchronous>, transform_indices = @transform_1, window_bounds = array<i64: 16, 128>}, {pipeline_mode = #tpu.pipeline_mode<synchronous>, transform_indices = @transform_2, window_bounds = array<i64: 1, 128>}, {transform_indices = @transform_3, window_bounds = array<i64: 1, 32, 32>}, {transform_indices = @transform_4, window_bounds = array<i64: 3, 128, 128>}, {pipeline_mode = #tpu.pipeline_mode<synchronous>, transform_indices = @transform_5, window_bounds = array<i64: 8, 32>}, {transform_indices = @transform_6, window_bounds = array<i64: 1, 128, 128>}, {pipeline_mode = #tpu.pipeline_mode<synchronous>, transform_indices = @transform_7, window_bounds = array<i64: 1, 128>}, {pipeline_mode = #tpu.pipeline_mode<synchronous>, transform_indices = @transform_8, window_bounds = array<i64: 128, 128>}, {pipeline_mode = #tpu.pipeline_mode<synchronous>, transform_indices = @transform_9, window_bounds = array<i64: 1, 128>}, {pipeline_mode = #tpu.pipeline_mode<synchronous>, transform_indices = @transform_10, window_bounds = array<i64: 8, 128>}]} {
    %c0_i32 = arith.constant 0 : i32
    %0 = arith.cmpi eq, %arg0, %c0_i32 : i32
    %1 = arith.extui %0 : i1 to i32
    %c0_i32_0 = arith.constant 0 : i32
    %2 = arith.cmpi ne, %1, %c0_i32_0 : i32
    scf.if %2 {
      %c0_32 = arith.constant 0 : index
      %c0_33 = arith.constant 0 : index
      %35 = vector.load %arg1[%c0_32, %c0_33] : memref<32x16xf32, #tpu.memory_space<vmem>>, vector<32x16xf32>
      %c0_34 = arith.constant 0 : index
      %c0_35 = arith.constant 0 : index
      %36 = vector.load %arg2[%c0_34, %c0_35] : memref<16x128xf32, #tpu.memory_space<vmem>>, vector<16x128xf32>
      %cst_36 = arith.constant dense<0.000000e+00> : vector<32x128xf32>
      %37 = tpu.matmul %35, %36, %cst_36 {dimension_numbers = #tpu.dot_dimension_numbers<[1], [0], [0], [1], [0, 0, 1, 1], [], []>} : vector<32x16xf32>, vector<16x128xf32>, vector<32x128xf32> -> vector<32x128xf32>
      %c0_37 = arith.constant 0 : index
      %c0_38 = arith.constant 0 : index
      %38 = vector.load %arg3[%c0_37, %c0_38] : memref<1x128xf32, #tpu.memory_space<vmem>>, vector<1x128xf32>
      %39 = vector.broadcast %38 : vector<1x128xf32> to vector<32x128xf32>
      %40 = arith.addf %37, %39 : vector<32x128xf32>
      %cst_39 = arith.constant 0.000000e+00 : f32
      %41 = vector.broadcast %cst_39 : f32 to vector<32x128xf32>
      %42 = arith.maximumf %40, %41 : vector<32x128xf32>
      %c0_40 = arith.constant 0 : index
      %c0_41 = arith.constant 0 : index
      %43 = vector.load %arg12[%c0_40, %c0_41] : memref<32x128xf32, #tpu.memory_space<vmem>>, vector<32x128xf32>
      tpu.vector_store %arg12[%c0_40, %c0_41], %42 {strides = array<i32>} : memref<32x128xf32, #tpu.memory_space<vmem>>, vector<32x128xf32>,
      %cst_42 = arith.constant 0.000000e+00 : f32
      %44 = vector.broadcast %cst_42 : f32 to vector<8x128xf32>
      %c0_43 = arith.constant 0 : index
      %c0_44 = arith.constant 0 : index
      %45 = vector.load %arg13[%c0_43, %c0_44] : memref<8x128xf32, #tpu.memory_space<vmem>>, vector<8x128xf32>
      tpu.vector_store %arg13[%c0_43, %c0_44], %44 {strides = array<i32>} : memref<8x128xf32, #tpu.memory_space<vmem>>, vector<8x128xf32>,
    } else {
    }
    %c0 = arith.constant 0 : index
    %c0_1 = arith.constant 0 : index
    %3 = vector.load %arg12[%c0, %c0_1] : memref<32x128xf32, #tpu.memory_space<vmem>>, vector<32x128xf32>
    %c0_2 = arith.constant 0 : index
    %c0_3 = arith.constant 0 : index
    %c0_4 = arith.constant 0 : index
    %4 = vector.load %arg4[%c0_2, %c0_3, %c0_4] : memref<1x32x32xf32, #tpu.memory_space<vmem>>, vector<1x32x32xf32>
    %5 = vector.shape_cast %4 : vector<1x32x32xf32> to vector<32x32xf32>
    %c0_5 = arith.constant 0 : index
    %c0_6 = arith.constant 0 : index
    %c0_7 = arith.constant 0 : index
    %6 = vector.load %arg5[%c0_5, %c0_6, %c0_7] : memref<3x128x128xf32, #tpu.memory_space<vmem>>, vector<1x128x128xf32>
    %7 = vector.shape_cast %6 : vector<1x128x128xf32> to vector<128x128xf32>
    %cst = arith.constant dense<0.000000e+00> : vector<32x128xf32>
    %8 = tpu.matmul %3, %7, %cst {dimension_numbers = #tpu.dot_dimension_numbers<[1], [0], [0], [1], [0, 0, 1, 1], [], []>} : vector<32x128xf32>, vector<128x128xf32>, vector<32x128xf32> -> vector<32x128xf32>
    %cst_8 = arith.constant dense<0.000000e+00> : vector<32x128xf32>
    %9 = tpu.matmul %5, %8, %cst_8 {dimension_numbers = #tpu.dot_dimension_numbers<[1], [0], [0], [1], [0, 0, 1, 1], [], []>} : vector<32x32xf32>, vector<32x128xf32>, vector<32x128xf32> -> vector<32x128xf32>
    %cst_9 = arith.constant 0.000000e+00 : f32
    %10 = vector.broadcast %cst_9 : f32 to vector<32x128xf32>
    %11 = arith.maximumf %9, %10 : vector<32x128xf32>
    %c1 = arith.constant 1 : index
    %c0_10 = arith.constant 0 : index
    %c0_11 = arith.constant 0 : index
    %12 = vector.load %arg5[%c1, %c0_10, %c0_11] : memref<3x128x128xf32, #tpu.memory_space<vmem>>, vector<1x128x128xf32>
    %13 = vector.shape_cast %12 : vector<1x128x128xf32> to vector<128x128xf32>
    %cst_12 = arith.constant dense<0.000000e+00> : vector<32x128xf32>
    %14 = tpu.matmul %11, %13, %cst_12 {dimension_numbers = #tpu.dot_dimension_numbers<[1], [0], [0], [1], [0, 0, 1, 1], [], []>} : vector<32x128xf32>, vector<128x128xf32>, vector<32x128xf32> -> vector<32x128xf32>
    %cst_13 = arith.constant dense<0.000000e+00> : vector<32x128xf32>
    %15 = tpu.matmul %5, %14, %cst_13 {dimension_numbers = #tpu.dot_dimension_numbers<[1], [0], [0], [1], [0, 0, 1, 1], [], []>} : vector<32x32xf32>, vector<32x128xf32>, vector<32x128xf32> -> vector<32x128xf32>
    %cst_14 = arith.constant 0.000000e+00 : f32
    %16 = vector.broadcast %cst_14 : f32 to vector<32x128xf32>
    %17 = arith.maximumf %15, %16 : vector<32x128xf32>
    %c2 = arith.constant 2 : index
    %c0_15 = arith.constant 0 : index
    %c0_16 = arith.constant 0 : index
    %18 = vector.load %arg5[%c2, %c0_15, %c0_16] : memref<3x128x128xf32, #tpu.memory_space<vmem>>, vector<1x128x128xf32>
    %19 = vector.shape_cast %18 : vector<1x128x128xf32> to vector<128x128xf32>
    %cst_17 = arith.constant dense<0.000000e+00> : vector<32x128xf32>
    %20 = tpu.matmul %17, %19, %cst_17 {dimension_numbers = #tpu.dot_dimension_numbers<[1], [0], [0], [1], [0, 0, 1, 1], [], []>} : vector<32x128xf32>, vector<128x128xf32>, vector<32x128xf32> -> vector<32x128xf32>
    %cst_18 = arith.constant dense<0.000000e+00> : vector<32x128xf32>
    %21 = tpu.matmul %5, %20, %cst_18 {dimension_numbers = #tpu.dot_dimension_numbers<[1], [0], [0], [1], [0, 0, 1, 1], [], []>} : vector<32x32xf32>, vector<32x128xf32>, vector<32x128xf32> -> vector<32x128xf32>
    %cst_19 = arith.constant 0.000000e+00 : f32
    %22 = vector.broadcast %cst_19 : f32 to vector<32x128xf32>
    %23 = arith.maximumf %21, %22 : vector<32x128xf32>
    %c0_20 = arith.constant 0 : index
    %c0_21 = arith.constant 0 : index
    %24 = vector.load %arg6[%c0_20, %c0_21] : memref<8x32xf32, #tpu.memory_space<vmem>>, vector<8x32xf32>
    %cst_22 = arith.constant dense<0.000000e+00> : vector<8x128xf32>
    %25 = tpu.matmul %24, %23, %cst_22 {dimension_numbers = #tpu.dot_dimension_numbers<[1], [0], [0], [1], [0, 0, 1, 1], [], []>} : vector<8x32xf32>, vector<32x128xf32>, vector<8x128xf32> -> vector<8x128xf32>
    %c0_23 = arith.constant 0 : index
    %c0_24 = arith.constant 0 : index
    %26 = vector.load %arg13[%c0_23, %c0_24] : memref<8x128xf32, #tpu.memory_space<vmem>>, vector<8x128xf32>
    %c0_25 = arith.constant 0 : index
    %c0_26 = arith.constant 0 : index
    %c0_27 = arith.constant 0 : index
    %27 = vector.load %arg7[%c0_25, %c0_26, %c0_27] : memref<1x128x128xf32, #tpu.memory_space<vmem>>, vector<1x128x128xf32>
    %28 = vector.shape_cast %27 : vector<1x128x128xf32> to vector<128x128xf32>
    %cst_28 = arith.constant dense<0.000000e+00> : vector<8x128xf32>
    %29 = tpu.matmul %25, %28, %cst_28 {dimension_numbers = #tpu.dot_dimension_numbers<[1], [0], [0], [1], [0, 0, 1, 1], [], []>} : vector<8x128xf32>, vector<128x128xf32>, vector<8x128xf32> -> vector<8x128xf32>
    %30 = arith.addf %26, %29 : vector<8x128xf32>
    %c0_29 = arith.constant 0 : index
    %c0_30 = arith.constant 0 : index
    %31 = vector.load %arg13[%c0_29, %c0_30] : memref<8x128xf32, #tpu.memory_space<vmem>>, vector<8x128xf32>
    tpu.vector_store %arg13[%c0_29, %c0_30], %30 {strides = array<i32>} : memref<8x128xf32, #tpu.memory_space<vmem>>, vector<8x128xf32>,
    %c1_i32 = arith.constant 1 : i32
    %32 = arith.cmpi eq, %arg0, %c1_i32 : i32
    %33 = arith.extui %32 : i1 to i32
    %c0_i32_31 = arith.constant 0 : i32
    %34 = arith.cmpi ne, %33, %c0_i32_31 : i32
    scf.if %34 {
      %c0_32 = arith.constant 0 : index
      %c0_33 = arith.constant 0 : index
      %35 = vector.load %arg13[%c0_32, %c0_33] : memref<8x128xf32, #tpu.memory_space<vmem>>, vector<8x128xf32>
      %c0_34 = arith.constant 0 : index
      %c0_35 = arith.constant 0 : index
      %36 = vector.load %arg8[%c0_34, %c0_35] : memref<1x128xf32, #tpu.memory_space<vmem>>, vector<1x128xf32>
      %37 = vector.broadcast %36 : vector<1x128xf32> to vector<8x128xf32>
      %38 = arith.addf %35, %37 : vector<8x128xf32>
      %cst_36 = arith.constant 0.000000e+00 : f32
      %39 = vector.broadcast %cst_36 : f32 to vector<8x128xf32>
      %40 = arith.maximumf %38, %39 : vector<8x128xf32>
      %c0_37 = arith.constant 0 : index
      %c0_38 = arith.constant 0 : index
      %41 = vector.load %arg9[%c0_37, %c0_38] : memref<128x128xf32, #tpu.memory_space<vmem>>, vector<128x128xf32>
      %cst_39 = arith.constant dense<0.000000e+00> : vector<8x128xf32>
      %42 = tpu.matmul %40, %41, %cst_39 {dimension_numbers = #tpu.dot_dimension_numbers<[1], [0], [0], [1], [0, 0, 1, 1], [], []>} : vector<8x128xf32>, vector<128x128xf32>, vector<8x128xf32> -> vector<8x128xf32>
      %c0_40 = arith.constant 0 : index
      %c0_41 = arith.constant 0 : index
      %43 = vector.load %arg10[%c0_40, %c0_41] : memref<1x128xf32, #tpu.memory_space<vmem>>, vector<1x128xf32>
      %44 = vector.broadcast %43 : vector<1x128xf32> to vector<8x128xf32>
      %45 = arith.addf %42, %44 : vector<8x128xf32>
      %c0_42 = arith.constant 0 : index
      %c0_43 = arith.constant 0 : index
      %46 = vector.load %arg11[%c0_42, %c0_43] : memref<8x128xf32, #tpu.memory_space<vmem>>, vector<8x128xf32>
      tpu.vector_store %arg11[%c0_42, %c0_43], %45 {strides = array<i32>} : memref<8x128xf32, #tpu.memory_space<vmem>>, vector<8x128xf32>,
    } else {
    }
    return
  }
  func.func @transform_0(%arg0: i32) -> (i32, i32) {
    %c0_i32 = arith.constant 0 : i32
    %c0_i32_0 = arith.constant 0 : i32
    %c0_i32_1 = arith.constant 0 : i32
    return %c0_i32, %c0_i32_0 : i32, i32
  }
  func.func @transform_1(%arg0: i32) -> (i32, i32) {
    %c0_i32 = arith.constant 0 : i32
    %c0_i32_0 = arith.constant 0 : i32
    %c0_i32_1 = arith.constant 0 : i32
    return %c0_i32, %c0_i32_0 : i32, i32
  }
  func.func @transform_2(%arg0: i32) -> (i32, i32) {
    %c0_i32 = arith.constant 0 : i32
    %c0_i32_0 = arith.constant 0 : i32
    %c0_i32_1 = arith.constant 0 : i32
    return %c0_i32, %c0_i32_0 : i32, i32
  }
  func.func @transform_3(%arg0: i32) -> (i32, i32, i32) {
    %c0_i32 = arith.constant 0 : i32
    %c0_i32_0 = arith.constant 0 : i32
    %c0_i32_1 = arith.constant 0 : i32
    return %arg0, %c0_i32, %c0_i32_0 : i32, i32, i32
  }
  func.func @transform_4(%arg0: i32) -> (i32, i32, i32) {
    %c0_i32 = arith.constant 0 : i32
    %c0_i32_0 = arith.constant 0 : i32
    %c0_i32_1 = arith.constant 0 : i32
    return %arg0, %c0_i32, %c0_i32_0 : i32, i32, i32
  }
  func.func @transform_5(%arg0: i32) -> (i32, i32) {
    %c0_i32 = arith.constant 0 : i32
    %c0_i32_0 = arith.constant 0 : i32
    %c0_i32_1 = arith.constant 0 : i32
    return %c0_i32, %c0_i32_0 : i32, i32
  }
  func.func @transform_6(%arg0: i32) -> (i32, i32, i32) {
    %c0_i32 = arith.constant 0 : i32
    %c0_i32_0 = arith.constant 0 : i32
    %c0_i32_1 = arith.constant 0 : i32
    return %arg0, %c0_i32, %c0_i32_0 : i32, i32, i32
  }
  func.func @transform_7(%arg0: i32) -> (i32, i32) {
    %c0_i32 = arith.constant 0 : i32
    %c0_i32_0 = arith.constant 0 : i32
    %c0_i32_1 = arith.constant 0 : i32
    return %c0_i32, %c0_i32_0 : i32, i32
  }
  func.func @transform_8(%arg0: i32) -> (i32, i32) {
    %c0_i32 = arith.constant 0 : i32
    %c0_i32_0 = arith.constant 0 : i32
    %c0_i32_1 = arith.constant 0 : i32
    return %c0_i32, %c0_i32_0 : i32, i32
  }
  func.func @transform_9(%arg0: i32) -> (i32, i32) {
    %c0_i32 = arith.constant 0 : i32
    %c0_i32_0 = arith.constant 0 : i32
    %c0_i32_1 = arith.constant 0 : i32
    return %c0_i32, %c0_i32_0 : i32, i32
  }
  func.func @transform_10(%arg0: i32) -> (i32, i32) {
    %c0_i32 = arith.constant 0 : i32
    %c0_i32_0 = arith.constant 0 : i32
    %c0_i32_1 = arith.constant 0 : i32
    return %c0_i32, %c0_i32_0 : i32, i32
  }
}

</mosaic_0001>

<llo_original>
// kernel: gcn_model_forward.1
$region0: #{gcn_model_forward.1}
  #allocation0 [shape = 'u32[]', space=smem, size = 0x4, offset = 0x4, fixed_abs, tag = 'smem constant byte address 0x4 - core index']
  #allocation1 [shape = 'u32[144,128]{1,0:T(1,128)}', space=vmem, size = 0x12000, scoped, tag = 'internal scratch']
  #allocation2 [shape = 'f32[32,128]{1,0:T(8,128)}', space=vmem, size = 0x4000, scoped, tag = 'scratch operand']
  #allocation3 [shape = 'f32[8,128]{1,0:T(8,128)}', space=vmem, size = 0x1000, scoped, tag = 'scratch operand']
  %s0 = inlined_call_operand.vmem [shape: f32[32,16], index: 0, kind: input, shape index: {}]
  %s1 = inlined_call_operand.hbm [shape: f32[16,128], index: 1, kind: input, shape index: {}]
  %s2 = inlined_call_operand.vmem [shape: f32[1,128], index: 2, kind: input, shape index: {}]
  %s3 = inlined_call_operand.vmem [shape: f32[2,32,32], index: 3, kind: input, shape index: {}]
  %s4 = inlined_call_operand.hbm [shape: f32[6,128,128], index: 4, kind: input, shape index: {}]
  %s5 = inlined_call_operand.vmem [shape: f32[8,32], index: 5, kind: input, shape index: {}]
  %s6 = inlined_call_operand.hbm [shape: f32[2,128,128], index: 6, kind: input, shape index: {}]
  %s7 = inlined_call_operand.vmem [shape: f32[1,128], index: 7, kind: input, shape index: {}]
  %s8 = inlined_call_operand.hbm [shape: f32[128,128], index: 8, kind: input, shape index: {}]
  %s9 = inlined_call_operand.vmem [shape: f32[1,128], index: 9, kind: input, shape index: {}]
  %s10 = inlined_call_operand.vmem [shape: f32[8,128], index: 10, kind: output, shape index: {}]
  %s11 = sld [smem:[#allocation0]]
  $region97: #{gcn_model_forward.1} parent=0
    _
  %s13 = ssub.s32 1, %s11
  %s14 = scalar_select 0, %s13, %s11
  $region1: #{gcn_model_forward.1} parent=0
    #allocation4 [shape = 'u8[8192]{0}', space=vmem, size = 0x2000, scoped, tag = 'input window, operand 1, single buffered']
    #allocation5 [shape = 's32[2]{0}', space=sflag, size = 0x8, scoped, tag = 'scoped memory for gcn_model_forward.1']
    #allocation6 [shape = 'u8[393216]{0}', space=vmem, size = 0x60000, scoped, tag = 'input window, operand 4']
    #allocation7 [shape = 's32[2]{0}', space=sflag, size = 0x8, scoped, tag = 'scoped memory for gcn_model_forward.1']
    #allocation8 [shape = 'u8[131072]{0}', space=vmem, size = 0x20000, scoped, tag = 'input window, operand 6']
    #allocation9 [shape = 'u8[65536]{0}', space=vmem, size = 0x10000, scoped, tag = 'input window, operand 8, single buffered']
    #allocation10 [shape = 's32[1]{0}', space=sflag, size = 0x4, scoped, tag = 'scoped memory for gcn_model_forward.1']
    %15 = vsyncpa [#allocation5], 0
    %16 = vsyncpa [#allocation7], 0
    %s17 = scalar_lea.sflag [#allocation7], 1
    %18 = vsyncpa %s17, 0
    %19 = vsyncpa [#allocation10], 0
    loop: start=0, step=1, limit=4
    $region2: #{gcn_model_forward.1} parent=1 // loop_pre_header
      _
    $region3: #{gcn_model_forward.1} parent=1 // loop_header
      %s21 = sphi 0, %s25
      %p22 = scmp.ge.s32.totalorder %s21, 4
      %s29 = sphi 0, %s29
      %s31 = sphi 0, %s29
      %s32 = sphi 0, %s31
      %s46 = sphi 0, %s32
      %s50 = sphi 0, %s50
      %s52 = sphi 0, %s50
      %s53 = sphi 0, %s52
      %s67 = sphi 0, %s53
      %s71 = sphi 0, %s71
      %s73 = sphi 0, %s71
      %s74 = sphi 0, %s73
      %s88 = sphi 0, %s74
      %s94 = sphi 0, %s96
      %s97 = sphi 0, %s94
      %s98 = sphi 0, %s97
      %s114 = sphi 0, %s98
      %s120 = sphi 0, %s122
      %s123 = sphi 0, %s120
      %s124 = sphi 0, %s123
      %s140 = sphi 0, %s124
      %s144 = sphi 0, %s144
      %s146 = sphi 0, %s144
      %s147 = sphi 0, %s146
      %s161 = sphi 0, %s147
      %s167 = sphi 0, %s169
      %s170 = sphi 0, %s167
      %s171 = sphi 0, %s170
      %s187 = sphi 0, %s171
      %s191 = sphi 0, %s191
      %s193 = sphi 0, %s191
      %s194 = sphi 0, %s193
      %s208 = sphi 0, %s194
      %s212 = sphi 0, %s212
      %s214 = sphi 0, %s212
      %s215 = sphi 0, %s214
      %s229 = sphi 0, %s215
      %s233 = sphi 0, %s233
      %s235 = sphi 0, %s233
      %s236 = sphi 0, %s235
      %s250 = sphi 0, %s236
      %s254 = sphi 0, %s254
      %s256 = sphi 0, %s254
      %s257 = sphi 0, %s256
      %s271 = sphi 0, %s257
    $region4: #{gcn_model_forward.1} parent=1 // loop_header_branch
      %24 = sbr.rel (%p22) target = $region8
    $region5: #{gcn_model_forward.1} parent=1 // loop_body
      %s26 = ssub.s32 %s21, 1
      %s27 = ssub.s32 %s21, 2
      %s28 = sadd.s32 %s21, 1
      %s30 = sadd.s32 %s29, 1
      %p33 = scmp.eq.s32.totalorder %s21, 1
      %p34 = scmp.ne.s32.totalorder %s29, %s31
      %p35 = scmp.eq.s32.totalorder %s21, 0
      %p36 = por %p34, %p35
      %p37 = scmp.ne.s32.totalorder %s29, %s31
      %p38 = scmp.eq.s32.totalorder %s26, 1
      %p39 = por %p37, %p38
      %p40 = scmp.ne.s32.totalorder %s31, %s32
      %p41 = scmp.eq.s32.totalorder %s26, 0
      %p42 = por %p40, %p41
      %p43 = scmp.ne.s32.totalorder %s31, %s32
      %p44 = scmp.eq.s32.totalorder %s27, 1
      %p45 = por %p43, %p44
      %p47 = scmp.ne.s32.totalorder %s32, %s46
      %p48 = scmp.eq.s32.totalorder %s27, 0
      %p49 = por %p47, %p48
      %s51 = sadd.s32 %s50, 1
      %p54 = scmp.eq.s32.totalorder %s21, 1
      %p55 = scmp.ne.s32.totalorder %s50, %s52
      %p56 = scmp.eq.s32.totalorder %s21, 0
      %p57 = por %p55, %p56
      %p58 = scmp.ne.s32.totalorder %s50, %s52
      %p59 = scmp.eq.s32.totalorder %s26, 1
      %p60 = por %p58, %p59
      %p61 = scmp.ne.s32.totalorder %s52, %s53
      %p62 = scmp.eq.s32.totalorder %s26, 0
      %p63 = por %p61, %p62
      %p64 = scmp.ne.s32.totalorder %s52, %s53
      %p65 = scmp.eq.s32.totalorder %s27, 1
      %p66 = por %p64, %p65
      %p68 = scmp.ne.s32.totalorder %s53, %s67
      %p69 = scmp.eq.s32.totalorder %s27, 0
      %p70 = por %p68, %p69
      %s72 = sadd.s32 %s71, 1
      %p75 = scmp.eq.s32.totalorder %s21, 1
      %p76 = scmp.ne.s32.totalorder %s71, %s73
      %p77 = scmp.eq.s32.totalorder %s21, 0
      %p78 = por %p76, %p77
      %p79 = scmp.ne.s32.totalorder %s71, %s73
      %p80 = scmp.eq.s32.totalorder %s26, 1
      %p81 = por %p79, %p80
      %p82 = scmp.ne.s32.totalorder %s73, %s74
      %p83 = scmp.eq.s32.totalorder %s26, 0
      %p84 = por %p82, %p83
      %p85 = scmp.ne.s32.totalorder %s73, %s74
      %p86 = scmp.eq.s32.totalorder %s27, 1
      %p87 = por %p85, %p86
      %p89 = scmp.ne.s32.totalorder %s74, %s88
      %p90 = scmp.eq.s32.totalorder %s27, 0
      %p91 = por %p89, %p90
      %s92 = ssub.s32 %s21, %s28
      %p93 = scmp.eq.s32.totalorder %s92, 0
      %s95 = sadd.s32 %s94, 1
      %s96 = scalar_select %p93, %s94, %s95
      %p99 = pneg %p93
      %p100 = scmp.eq.s32.totalorder %s21, 1
      %p101 = por %p99, %p100
      %p102 = scmp.ne.s32.totalorder %s94, %s97
      %p103 = scmp.eq.s32.totalorder %s21, 0
      %p104 = por %p102, %p103
      %p105 = scmp.ne.s32.totalorder %s94, %s97
      %p106 = scmp.eq.s32.totalorder %s26, 1
      %p107 = por %p105, %p106
      %p108 = scmp.ne.s32.totalorder %s97, %s98
      %p109 = scmp.eq.s32.totalorder %s26, 0
      %p110 = por %p108, %p109
      %p111 = scmp.ne.s32.totalorder %s97, %s98
      %p112 = scmp.eq.s32.totalorder %s27, 1
      %p113 = por %p111, %p112
      %p115 = scmp.ne.s32.totalorder %s98, %s114
      %p116 = scmp.eq.s32.totalorder %s27, 0
      %p117 = por %p115, %p116
      %s118 = ssub.s32 %s21, %s28
      %p119 = scmp.eq.s32.totalorder %s118, 0
      %s121 = sadd.s32 %s120, 1
      %s122 = scalar_select %p119, %s120, %s121
      %p125 = pneg %p119
      %p126 = scmp.eq.s32.totalorder %s21, 1
      %p127 = por %p125, %p126
      %p128 = scmp.ne.s32.totalorder %s120, %s123
      %p129 = scmp.eq.s32.totalorder %s21, 0
      %p130 = por %p128, %p129
      %p131 = scmp.ne.s32.totalorder %s120, %s123
      %p132 = scmp.eq.s32.totalorder %s26, 1
      %p133 = por %p131, %p132
      %p134 = scmp.ne.s32.totalorder %s123, %s124
      %p135 = scmp.eq.s32.totalorder %s26, 0
      %p136 = por %p134, %p135
      %p137 = scmp.ne.s32.totalorder %s123, %s124
      %p138 = scmp.eq.s32.totalorder %s27, 1
      %p139 = por %p137, %p138
      %p141 = scmp.ne.s32.totalorder %s124, %s140
      %p142 = scmp.eq.s32.totalorder %s27, 0
      %p143 = por %p141, %p142
      %s145 = sadd.s32 %s144, 1
      %p148 = scmp.eq.s32.totalorder %s21, 1
      %p149 = scmp.ne.s32.totalorder %s144, %s146
      %p150 = scmp.eq.s32.totalorder %s21, 0
      %p151 = por %p149, %p150
      %p152 = scmp.ne.s32.totalorder %s144, %s146
      %p153 = scmp.eq.s32.totalorder %s26, 1
      %p154 = por %p152, %p153
      %p155 = scmp.ne.s32.totalorder %s146, %s147
      %p156 = scmp.eq.s32.totalorder %s26, 0
      %p157 = por %p155, %p156
      %p158 = scmp.ne.s32.totalorder %s146, %s147
      %p159 = scmp.eq.s32.totalorder %s27, 1
      %p160 = por %p158, %p159
      %p162 = scmp.ne.s32.totalorder %s147, %s161
      %p163 = scmp.eq.s32.totalorder %s27, 0
      %p164 = por %p162, %p163
      %s165 = ssub.s32 %s21, %s28
      %p166 = scmp.eq.s32.totalorder %s165, 0
      %s168 = sadd.s32 %s167, 1
      %s169 = scalar_select %p166, %s167, %s168
      %p172 = pneg %p166
      %p173 = scmp.eq.s32.totalorder %s21, 1
      %p174 = por %p172, %p173
      %p175 = scmp.ne.s32.totalorder %s167, %s170
      %p176 = scmp.eq.s32.totalorder %s21, 0
      %p177 = por %p175, %p176
      %p178 = scmp.ne.s32.totalorder %s167, %s170
      %p179 = scmp.eq.s32.totalorder %s26, 1
      %p180 = por %p178, %p179
      %p181 = scmp.ne.s32.totalorder %s170, %s171
      %p182 = scmp.eq.s32.totalorder %s26, 0
      %p183 = por %p181, %p182
      %p184 = scmp.ne.s32.totalorder %s170, %s171
      %p185 = scmp.eq.s32.totalorder %s27, 1
      %p186 = por %p184, %p185
      %p188 = scmp.ne.s32.totalorder %s171, %s187
      %p189 = scmp.eq.s32.totalorder %s27, 0
      %p190 = por %p188, %p189
      %s192 = sadd.s32 %s191, 1
      %p195 = scmp.eq.s32.totalorder %s21, 1
      %p196 = scmp.ne.s32.totalorder %s191, %s193
      %p197 = scmp.eq.s32.totalorder %s21, 0
      %p198 = por %p196, %p197
      %p199 = scmp.ne.s32.totalorder %s191, %s193
      %p200 = scmp.eq.s32.totalorder %s26, 1
      %p201 = por %p199, %p200
      %p202 = scmp.ne.s32.totalorder %s193, %s194
      %p203 = scmp.eq.s32.totalorder %s26, 0
      %p204 = por %p202, %p203
      %p205 = scmp.ne.s32.totalorder %s193, %s194
      %p206 = scmp.eq.s32.totalorder %s27, 1
      %p207 = por %p205, %p206
      %p209 = scmp.ne.s32.totalorder %s194, %s208
      %p210 = scmp.eq.s32.totalorder %s27, 0
      %p211 = por %p209, %p210
      %s213 = sadd.s32 %s212, 1
      %p216 = scmp.eq.s32.totalorder %s21, 1
      %p217 = scmp.ne.s32.totalorder %s212, %s214
      %p218 = scmp.eq.s32.totalorder %s21, 0
      %p219 = por %p217, %p218
      %p220 = scmp.ne.s32.totalorder %s212, %s214
      %p221 = scmp.eq.s32.totalorder %s26, 1
      %p222 = por %p220, %p221
      %p223 = scmp.ne.s32.totalorder %s214, %s215
      %p224 = scmp.eq.s32.totalorder %s26, 0
      %p225 = por %p223, %p224
      %p226 = scmp.ne.s32.totalorder %s214, %s215
      %p227 = scmp.eq.s32.totalorder %s27, 1
      %p228 = por %p226, %p227
      %p230 = scmp.ne.s32.totalorder %s215, %s229
      %p231 = scmp.eq.s32.totalorder %s27, 0
      %p232 = por %p230, %p231
      %s234 = sadd.s32 %s233, 1
      %p237 = scmp.eq.s32.totalorder %s21, 1
      %p238 = scmp.ne.s32.totalorder %s233, %s235
      %p239 = scmp.eq.s32.totalorder %s21, 0
      %p240 = por %p238, %p239
      %p241 = scmp.ne.s32.totalorder %s233, %s235
      %p242 = scmp.eq.s32.totalorder %s26, 1
      %p243 = por %p241, %p242
      %p244 = scmp.ne.s32.totalorder %s235, %s236
      %p245 = scmp.eq.s32.totalorder %s26, 0
      %p246 = por %p244, %p245
      %p247 = scmp.ne.s32.totalorder %s235, %s236
      %p248 = scmp.eq.s32.totalorder %s27, 1
      %p249 = por %p247, %p248
      %p251 = scmp.ne.s32.totalorder %s236, %s250
      %p252 = scmp.eq.s32.totalorder %s27, 0
      %p253 = por %p251, %p252
      %s255 = sadd.s32 %s254, 1
      %p258 = scmp.eq.s32.totalorder %s21, 1
      %p259 = scmp.ne.s32.totalorder %s254, %s256
      %p260 = scmp.eq.s32.totalorder %s21, 0
      %p261 = por %p259, %p260
      %p262 = scmp.ne.s32.totalorder %s254, %s256
      %p263 = scmp.eq.s32.totalorder %s26, 1
      %p264 = por %p262, %p263
      %p265 = scmp.ne.s32.totalorder %s256, %s257
      %p266 = scmp.eq.s32.totalorder %s26, 0
      %p267 = por %p265, %p266
      %p268 = scmp.ne.s32.totalorder %s256, %s257
      %p269 = scmp.eq.s32.totalorder %s27, 1
      %p270 = por %p268, %p269
      %p272 = scmp.ne.s32.totalorder %s257, %s271
      %p273 = scmp.eq.s32.totalorder %s27, 0
      %p274 = por %p272, %p273
      %p275 = scmp.le.s32.totalorder 1, %s21
      %p276 = scmp.lt.s32.totalorder %s21, 3
      %p277 = pnand %p275, %p276
      %p278 = pneg %p277
      // Predicated region
      $region9: #{gcn_model_forward.1} parent=5 // pred_check
        _
      $region10: #{gcn_model_forward.1} parent=5 // pred_check_branch
        %280 = sbr.rel (%p277) target = $region12
      $region11: #{gcn_model_forward.1} parent=5 // pred_region
        %s281 = ssub.s32 %s21, 1
        // Predicated region
        $region13: #{gcn_model_forward.1} parent=11 // pred_check
          %p282 = pneg %p42
        $region14: #{gcn_model_forward.1} parent=11 // pred_check_branch
          %284 = sbr.rel (%p282) target = $region16
        $region15: #{gcn_model_forward.1} parent=11 // pred_region
          _
        $region16: #{gcn_model_forward.1} parent=11 // pred_fallthru
          _
        // Predicated region
        $region17: #{gcn_model_forward.1} parent=11 // pred_check
          %p285 = pneg %p63
        $region18: #{gcn_model_forward.1} parent=11 // pred_check_branch
          %287 = sbr.rel (%p285) target = $region20
        $region19: #{gcn_model_forward.1} parent=11 // pred_region
          %s289 = ssub.s32 256, 256
          %290 = vsyncadd [#allocation5], %s289
          %s291 = sshll.u32 [#allocation4], 4
          %s292 = int_to_ptr.vmem [resolvable:$true] %s291
          %297 = dma.hbm_to_vmem [thread:$0]  %s1, 256, %s292, [#allocation5], 128, 128, 8
        $region20: #{gcn_model_forward.1} parent=11 // pred_fallthru
          _
        // Predicated region
        $region21: #{gcn_model_forward.1} parent=11 // pred_check
          %p298 = pneg %p84
        $region22: #{gcn_model_forward.1} parent=11 // pred_check_branch
          %300 = sbr.rel (%p298) target = $region24
        $region23: #{gcn_model_forward.1} parent=11 // pred_region
          _
        $region24: #{gcn_model_forward.1} parent=11 // pred_fallthru
          _
        // Predicated region
        $region25: #{gcn_model_forward.1} parent=11 // pred_check
          %p301 = pneg %p157
        $region26: #{gcn_model_forward.1} parent=11 // pred_check_branch
          %303 = sbr.rel (%p301) target = $region28
        $region27: #{gcn_model_forward.1} parent=11 // pred_region
          _
        $region28: #{gcn_model_forward.1} parent=11 // pred_fallthru
          _
        // Predicated region
        $region29: #{gcn_model_forward.1} parent=11 // pred_check
          %p304 = pneg %p204
        $region30: #{gcn_model_forward.1} parent=11 // pred_check_branch
          %306 = sbr.rel (%p304) target = $region32
        $region31: #{gcn_model_forward.1} parent=11 // pred_region
          _
        $region32: #{gcn_model_forward.1} parent=11 // pred_fallthru
          _
        // Predicated region
        $region33: #{gcn_model_forward.1} parent=11 // pred_check
          %p307 = pneg %p225
        $region34: #{gcn_model_forward.1} parent=11 // pred_check_branch
          %309 = sbr.rel (%p307) target = $region36
        $region35: #{gcn_model_forward.1} parent=11 // pred_region
          %s311 = ssub.s32 2048, 2048
          %312 = vsyncadd [#allocation10], %s311
          %s313 = sshll.u32 [#allocation9], 4
          %s314 = int_to_ptr.vmem [resolvable:$true] %s313
          %319 = dma.hbm_to_vmem [thread:$0]  %s8, 2048, %s314, [#allocation10], 128, 128, 8
        $region36: #{gcn_model_forward.1} parent=11 // pred_fallthru
          _
        // Predicated region
        $region37: #{gcn_model_forward.1} parent=11 // pred_check
          %p320 = pneg %p246
        $region38: #{gcn_model_forward.1} parent=11 // pred_check_branch
          %322 = sbr.rel (%p320) target = $region40
        $region39: #{gcn_model_forward.1} parent=11 // pred_region
          _
        $region40: #{gcn_model_forward.1} parent=11 // pred_fallthru
          _
      $region12: #{gcn_model_forward.1} parent=5 // pred_fallthru
        _
      %p323 = scmp.lt.s32.totalorder %s21, 2
      // Predicated region
      $region41: #{gcn_model_forward.1} parent=5 // pred_check
        %p324 = pneg %p323
      $region42: #{gcn_model_forward.1} parent=5 // pred_check_branch
        %326 = sbr.rel (%p324) target = $region44
      $region43: #{gcn_model_forward.1} parent=5 // pred_region
        // Predicated region
        $region45: #{gcn_model_forward.1} parent=43 // pred_check
          %p327 = pneg %p104
        $region46: #{gcn_model_forward.1} parent=43 // pred_check_branch
          %329 = sbr.rel (%p327) target = $region48
        $region47: #{gcn_model_forward.1} parent=43 // pred_region
          %p330 = scmp.lt.s32.totalorder %s21, 1
          %s331 = scalar_select %p330, %s21, 1
          %s332 = smul.addr %s331, 4
          %s333 = smul.addr %s332, 8
          %s334 = scalar_lea.vmem %s3, %s333
        $region48: #{gcn_model_forward.1} parent=43 // pred_fallthru
          _
        // Predicated region
        $region49: #{gcn_model_forward.1} parent=43 // pred_check
          %p335 = pneg %p130
        $region50: #{gcn_model_forward.1} parent=43 // pred_check_branch
          %337 = sbr.rel (%p335) target = $region52
        $region51: #{gcn_model_forward.1} parent=43 // pred_region
          %s338 = sand.u32 %s21, 1
          %s339 = scalar_lea.sflag [#allocation7], %s338
          %s340 = sand.u32 %s120, 1
          %s341 = smul.addr %s340, 384
          %s342 = scalar_lea.vmem [#allocation6], %s341
          %s343 = smul.u32 3, %s21
          %s345 = ssub.s32 6144, 6144
          %346 = vsyncadd %s339, %s345
          %s347 = smul.addr %s343, 16
          %s348 = smul.addr %s347, 128
          %s349 = scalar_lea.hbm %s4, %s348
          %s350 = sshll.u32 %s342, 4
          %s351 = int_to_ptr.vmem [resolvable:$true] %s350
          %356 = dma.hbm_to_vmem [thread:$0]  %s349, 6144, %s351, %s339, 128, 128, 8
        $region52: #{gcn_model_forward.1} parent=43 // pred_fallthru
          _
        // Predicated region
        $region53: #{gcn_model_forward.1} parent=43 // pred_check
          %p357 = pneg %p177
        $region54: #{gcn_model_forward.1} parent=43 // pred_check_branch
          %359 = sbr.rel (%p357) target = $region56
        $region55: #{gcn_model_forward.1} parent=43 // pred_region
          %s360 = sand.u32 %s21, 1
          %s361 = scalar_lea.sflag [#allocation7], %s360
          %s362 = sand.u32 %s167, 1
          %s363 = smul.addr %s362, 128
          %s364 = scalar_lea.vmem [#allocation8], %s363
          %s366 = ssub.s32 2048, 2048
          %367 = vsyncadd %s361, %s366
          %s368 = smul.addr %s21, 16
          %s369 = smul.addr %s368, 128
          %s370 = scalar_lea.hbm %s6, %s369
          %s371 = sshll.u32 %s364, 4
          %s372 = int_to_ptr.vmem [resolvable:$true] %s371
          %377 = dma.hbm_to_vmem [thread:$0]  %s370, 2048, %s372, %s361, 128, 128, 8
        $region56: #{gcn_model_forward.1} parent=43 // pred_fallthru
          _
      $region44: #{gcn_model_forward.1} parent=5 // pred_fallthru
        _
      %p378 = scmp.le.s32.totalorder 1, %s21
      %p379 = scmp.lt.s32.totalorder %s21, 3
      %p380 = pnand %p378, %p379
      %p381 = pneg %p380
      // Predicated region
      $region57: #{gcn_model_forward.1} parent=5 // pred_check
        _
      $region58: #{gcn_model_forward.1} parent=5 // pred_check_branch
        %383 = sbr.rel (%p380) target = $region60
      $region59: #{gcn_model_forward.1} parent=5 // pred_region
        %s384 = ssub.s32 %s21, 1
        // Predicated region
        $region61: #{gcn_model_forward.1} parent=59 // pred_check
          %p385 = pneg %p63
        $region62: #{gcn_model_forward.1} parent=59 // pred_check_branch
          %387 = sbr.rel (%p385) target = $region64
        $region63: #{gcn_model_forward.1} parent=59 // pred_region
          %388 = dma.done [#allocation5], 256
        $region64: #{gcn_model_forward.1} parent=59 // pred_fallthru
          _
        %s389 = sand.u32 %s26, 1
        %s390 = scalar_lea.sflag [#allocation7], %s389
        %s391 = sand.u32 %s123, 1
        %s392 = smul.addr %s391, 384
        %s393 = scalar_lea.vmem [#allocation6], %s392
        // Predicated region
        $region65: #{gcn_model_forward.1} parent=59 // pred_check
          %p394 = pneg %p136
        $region66: #{gcn_model_forward.1} parent=59 // pred_check_branch
          %396 = sbr.rel (%p394) target = $region68
        $region67: #{gcn_model_forward.1} parent=59 // pred_region
          %397 = dma.done %s390, 6144
        $region68: #{gcn_model_forward.1} parent=59 // pred_fallthru
          _
        %s398 = sand.u32 %s26, 1
        %s399 = scalar_lea.sflag [#allocation7], %s398
        %s400 = sand.u32 %s170, 1
        %s401 = smul.addr %s400, 128
        %s402 = scalar_lea.vmem [#allocation8], %s401
        // Predicated region
        $region69: #{gcn_model_forward.1} parent=59 // pred_check
          %p403 = pneg %p183
        $region70: #{gcn_model_forward.1} parent=59 // pred_check_branch
          %405 = sbr.rel (%p403) target = $region72
        $region71: #{gcn_model_forward.1} parent=59 // pred_region
          %406 = dma.done %s399, 2048
        $region72: #{gcn_model_forward.1} parent=59 // pred_fallthru
          _
        // Predicated region
        $region73: #{gcn_model_forward.1} parent=59 // pred_check
          %p407 = pneg %p225
        $region74: #{gcn_model_forward.1} parent=59 // pred_check_branch
          %409 = sbr.rel (%p407) target = $region76
        $region75: #{gcn_model_forward.1} parent=59 // pred_region
          %410 = dma.done [#allocation10], 2048
        $region76: #{gcn_model_forward.1} parent=59 // pred_fallthru
          _
        %p411 = pneg %p42
        %p412 = pneg %p39
        %p413 = pneg %p63
        %p414 = pneg %p60
        %p415 = pneg %p84
        %p416 = pneg %p81
        %p417 = scmp.lt.s32.totalorder %s26, 1
        %s418 = scalar_select %p417, %s26, 1
        %s419 = smul.addr %s418, 4
        %s420 = smul.addr %s419, 8
        %s421 = scalar_lea.vmem %s3, %s420
        %p422 = pneg %p110
        %p423 = pneg %p107
        %s424 = sand.u32 %s26, 1
        %s425 = scalar_lea.sflag [#allocation7], %s424
        %s426 = sand.u32 %s123, 1
        %s427 = smul.addr %s426, 384
        %s428 = scalar_lea.vmem [#allocation6], %s427
        %p429 = pneg %p136
        %p430 = pneg %p133
        %p431 = pneg %p157
        %p432 = pneg %p154
        %s433 = sand.u32 %s26, 1
        %s434 = scalar_lea.sflag [#allocation7], %s433
        %s435 = sand.u32 %s170, 1
        %s436 = smul.addr %s435, 128
        %s437 = scalar_lea.vmem [#allocation8], %s436
        %p438 = pneg %p183
        %p439 = pneg %p180
        %p440 = pneg %p204
        %p441 = pneg %p201
        %p442 = pneg %p225
        %p443 = pneg %p222
        %p444 = pneg %p246
        %p445 = pneg %p243
        %p446 = pneg %p267
        %p447 = pneg %p264
        %p448 = scmp.lt.s32.totalorder %s26, 1
        %s449 = scalar_select %p448, %s26, 1
        %s450 = smul.addr %s449, 4
        %s451 = smul.addr %s450, 8
        %s452 = scalar_lea.vmem %s3, %s451
        %s453 = smul.u32 3, %s26
        %p454 = scmp.eq.s32.totalorder %s26, 0
        // Predicated region
        $region77: #{gcn_model_forward.1} parent=59 // pred_check
          %p455 = pneg %p454
        $region78: #{gcn_model_forward.1} parent=59 // pred_check_branch
          %457 = sbr.rel (%p455) target = $region80
        $region79: #{gcn_model_forward.1} parent=59 // pred_region
          %v458 = vld [vmem:[%s0] sm:$0xff]
          %v459 = vld [vmem:[%s0 + $0x8] sm:$0xff]
          %v460 = vld [vmem:[%s0 + $0x10] sm:$0xff]
          %v461 = vld [vmem:[%s0 + $0x18] sm:$0xff]
          %v462 = vld [vmem:[#allocation4] sm:$0xff]
          %v463 = vld [vmem:[#allocation4 + $0x8] sm:$0xff]
          %v464 = vld [vmem:[%s2] sm:$0x1]
          %v466 = vlaneseq
          %v467 = vshrl.u32 %v466, 7
          %v468 = vsub.s32 0, %v467
          %v469 = vrot.slane %v464, %v468
          %vm471 = vcmask 130048
          %v473 = vsel %vm471, %v458, 0
          %v476 = vsel %vm471, %v459, 0
          %v479 = vsel %vm471, %v460, 0
          %v482 = vsel %vm471, %v461, 0
          %484 = vmatprep.subr.mxu0 0.0
          %485 = vmatpush1.msra.mxu0 %v462
          %486 = vmatprep.subr.mxu0 0.0
          %487 = vmatpush1.msra.mxu0 %v463
          %488 = vmatprep.subr.mxu0 0.0
          %489 = vmatpush1.msra.mxu0 0.0
          %490 = vmatprep.subr.mxu0 0.0
          %491 = vmatpush1.msra.mxu0 0.0
          %492 = vmatprep.subr.mxu0 0.0
          %493 = vmatpush1.msra.mxu0 0.0
          %494 = vmatprep.subr.mxu0 0.0
          %495 = vmatpush1.msra.mxu0 0.0
          %496 = vmatprep.subr.mxu0 0.0
          %497 = vmatpush1.msra.mxu0 0.0
          %498 = vmatprep.subr.mxu0 0.0
          %499 = vmatpush1.msra.mxu0 0.0
          %500 = vmatprep.subr.mxu0 0.0
          %501 = vmatpush1.msra.mxu0 0.0
          %502 = vmatprep.subr.mxu0 0.0
          %503 = vmatpush1.msra.mxu0 0.0
          %504 = vmatprep.subr.mxu0 0.0
          %505 = vmatpush1.msra.mxu0 0.0
          %506 = vmatprep.subr.mxu0 0.0
          %507 = vmatpush1.msra.mxu0 0.0
          %508 = vmatprep.subr.mxu0 0.0
          %509 = vmatpush1.msra.mxu0 0.0
          %510 = vmatprep.subr.mxu0 0.0
          %511 = vmatpush1.msra.mxu0 0.0
          %512 = vmatprep.subr.mxu0 0.0
          %513 = vmatpush1.msra.mxu0 0.0
          %514 = vmatprep.subr.mxu0 0.0
          %515 = vmatpush1.msra.mxu0 0.0
          %516 = vmatprep.subr.mxu0 0.0
          %517 = vmatpush1.msra.mxu0 0.0
          %518 = vmatprep.subr.mxu0 0.0
          %519 = vmatpush1.msra.mxu0 0.0
          %520 = vmatprep.subr.mxu0 0.0
          %521 = vmatpush1.msra.mxu0 0.0
          %522 = vmatprep.subr.mxu0 0.0
          %523 = vmatpush1.msra.mxu0 0.0
          %524 = vmatprep.subr.mxu0 0.0
          %525 = vmatpush1.msra.mxu0 0.0
          %526 = vmatprep.subr.mxu0 0.0
          %527 = vmatpush1.msra.mxu0 0.0
          %528 = vmatprep.subr.mxu0 0.0
          %529 = vmatpush1.msra.mxu0 0.0
          %530 = vmatprep.subr.mxu0 0.0
          %531 = vmatpush1.msra.mxu0 0.0
          %532 = vmatprep.subr.mxu0 0.0
          %533 = vmatpush1.msra.mxu0 0.0
          %534 = vmatprep.subr.mxu0 0.0
          %535 = vmatpush1.msra.mxu0 0.0
          %536 = vmatprep.subr.mxu0 0.0
          %537 = vmatpush1.msra.mxu0 0.0
          %538 = vmatprep.subr.mxu0 0.0
          %539 = vmatpush1.msra.mxu0 0.0
          %540 = vmatprep.subr.mxu0 0.0
          %541 = vmatpush1.msra.mxu0 0.0
          %542 = vmatprep.subr.mxu0 0.0
          %543 = vmatpush1.msra.mxu0 0.0
          %544 = vmatprep.subr.mxu0 0.0
          %545 = vmatpush1.msra.mxu0 0.0
          %546 = vmatprep.subr.mxu0 0.0
          %547 = vmatpush1.msra.mxu0 0.0
          %548 = vmatprep.mubr.f32.mxu0 0.0
          %549 = vmatmul.mubr.f32.gmra.mrb[0].mxu0 %v473
          %v550 = vpop.f32.mrb[0].mxu0
          %v551 = vadd.f32 %v469, %v550
          %v552 = vpop.f32.mrb[0].mxu0
          %553 = vmatprep.mubr.f32.mxu0 0.0
          %554 = vmatmul.mubr.f32.gmra.mrb[0].mxu0 %v476
          %v555 = vpop.f32.mrb[0].mxu0
          %v556 = vadd.f32 %v469, %v555
          %v557 = vpop.f32.mrb[0].mxu0
          %558 = vmatprep.mubr.f32.mxu0 0.0
          %559 = vmatmul.mubr.f32.gmra.mrb[0].mxu0 %v479
          %v560 = vpop.f32.mrb[0].mxu0
          %v561 = vadd.f32 %v469, %v560
          %v562 = vpop.f32.mrb[0].mxu0
          %563 = vmatprep.mubr.f32.mxu0 0.0
          %564 = vmatmul.mubr.f32.gmra.mrb[0].mxu0 %v482
          %v565 = vpop.f32.mrb[0].mxu0
          %v566 = vadd.f32 %v469, %v565
          %v567 = vpop.f32.mrb[0].mxu0
          %568 = vdwg.mxu0
          %v569 = vmax.f32 %v551, 0.0
          %v570 = vmax.f32 %v556, 0.0
          %v571 = vmax.f32 %v561, 0.0
          %v572 = vmax.f32 %v566, 0.0
          %573 = vst [vmem:[#allocation2] sm:$0xff] %v569
          %574 = vst [vmem:[#allocation2 + $0x8] sm:$0xff] %v570
          %575 = vst [vmem:[#allocation2 + $0x10] sm:$0xff] %v571
          %576 = vst [vmem:[#allocation2 + $0x18] sm:$0xff] %v572
          %577 = vst [vmem:[#allocation3] sm:$0xff] 0.0
        $region80: #{gcn_model_forward.1} parent=59 // pred_fallthru
          _
        %v578 = vld [vmem:[#allocation2] sm:$0xff]
        %v579 = vld [vmem:[#allocation2 + $0x8] sm:$0xff]
        %v580 = vld [vmem:[#allocation2 + $0x10] sm:$0xff]
        %v581 = vld [vmem:[#allocation2 + $0x18] sm:$0xff]
        %v582 = vld [vmem:[%s452] sm:$0xff]
        %v583 = vld [vmem:[%s452 + $0x8] sm:$0xff]
        %v584 = vld [vmem:[%s452 + $0x10] sm:$0xff]
        %v585 = vld [vmem:[%s452 + $0x18] sm:$0xff]
        %v586 = vld [vmem:[%s393] sm:$0xff]
        %v587 = vld [vmem:[%s393 + $0x8] sm:$0xff]
        %v588 = vld [vmem:[%s393 + $0x10] sm:$0xff]
        %v589 = vld [vmem:[%s393 + $0x18] sm:$0xff]
        %v590 = vld [vmem:[%s393 + $0x20] sm:$0xff]
        %v591 = vld [vmem:[%s393 + $0x28] sm:$0xff]
        %v592 = vld [vmem:[%s393 + $0x30] sm:$0xff]
        %v593 = vld [vmem:[%s393 + $0x38] sm:$0xff]
        %v594 = vld [vmem:[%s393 + $0x40] sm:$0xff]
        %v595 = vld [vmem:[%s393 + $0x48] sm:$0xff]
        %v596 = vld [vmem:[%s393 + $0x50] sm:$0xff]
        %v597 = vld [vmem:[%s393 + $0x58] sm:$0xff]
        %v598 = vld [vmem:[%s393 + $0x60] sm:$0xff]
        %v599 = vld [vmem:[%s393 + $0x68] sm:$0xff]
        %v600 = vld [vmem:[%s393 + $0x70] sm:$0xff]
        %v601 = vld [vmem:[%s393 + $0x78] sm:$0xff]
        %602 = vmatprep.subr.mxu0 0.0
        %603 = vmatpush1.msra.mxu0 %v586
        %604 = vmatprep.subr.mxu0 0.0
        %605 = vmatpush1.msra.mxu0 %v587
        %606 = vmatprep.subr.mxu0 0.0
        %607 = vmatpush1.msra.mxu0 %v588
        %608 = vmatprep.subr.mxu0 0.0
        %609 = vmatpush1.msra.mxu0 %v589
        %610 = vmatprep.subr.mxu0 0.0
        %611 = vmatpush1.msra.mxu0 %v590
        %612 = vmatprep.subr.mxu0 0.0
        %613 = vmatpush1.msra.mxu0 %v591
        %614 = vmatprep.subr.mxu0 0.0
        %615 = vmatpush1.msra.mxu0 %v592
        %616 = vmatprep.subr.mxu0 0.0
        %617 = vmatpush1.msra.mxu0 %v593
        %618 = vmatprep.subr.mxu0 0.0
        %619 = vmatpush1.msra.mxu0 %v594
        %620 = vmatprep.subr.mxu0 0.0
        %621 = vmatpush1.msra.mxu0 %v595
        %622 = vmatprep.subr.mxu0 0.0
        %623 = vmatpush1.msra.mxu0 %v596
        %624 = vmatprep.subr.mxu0 0.0
        %625 = vmatpush1.msra.mxu0 %v597
        %626 = vmatprep.subr.mxu0 0.0
        %627 = vmatpush1.msra.mxu0 %v598
        %628 = vmatprep.subr.mxu0 0.0
        %629 = vmatpush1.msra.mxu0 %v599
        %630 = vmatprep.subr.mxu0 0.0
        %631 = vmatpush1.msra.mxu0 %v600
        %632 = vmatprep.subr.mxu0 0.0
        %633 = vmatpush1.msra.mxu0 %v601
        %634 = vmatprep.subr.mxu0 0.0
        %635 = vmatpush1.msra.mxu0 0.0
        %636 = vmatprep.subr.mxu0 0.0
        %637 = vmatpush1.msra.mxu0 0.0
        %638 = vmatprep.subr.mxu0 0.0
        %639 = vmatpush1.msra.mxu0 0.0
        %640 = vmatprep.subr.mxu0 0.0
        %641 = vmatpush1.msra.mxu0 0.0
        %642 = vmatprep.subr.mxu0 0.0
        %643 = vmatpush1.msra.mxu0 0.0
        %644 = vmatprep.subr.mxu0 0.0
        %645 = vmatpush1.msra.mxu0 0.0
        %646 = vmatprep.subr.mxu0 0.0
        %647 = vmatpush1.msra.mxu0 0.0
        %648 = vmatprep.subr.mxu0 0.0
        %649 = vmatpush1.msra.mxu0 0.0
        %650 = vmatprep.subr.mxu0 0.0
        %651 = vmatpush1.msra.mxu0 0.0
        %652 = vmatprep.subr.mxu0 0.0
        %653 = vmatpush1.msra.mxu0 0.0
        %654 = vmatprep.subr.mxu0 0.0
        %655 = vmatpush1.msra.mxu0 0.0
        %656 = vmatprep.subr.mxu0 0.0
        %657 = vmatpush1.msra.mxu0 0.0
        %658 = vmatprep.subr.mxu0 0.0
        %659 = vmatpush1.msra.mxu0 0.0
        %660 = vmatprep.subr.mxu0 0.0
        %661 = vmatpush1.msra.mxu0 0.0
        %662 = vmatprep.subr.mxu0 0.0
        %663 = vmatpush1.msra.mxu0 0.0
        %664 = vmatprep.subr.mxu0 0.0
        %665 = vmatpush1.msra.mxu0 0.0
        %666 = vmatprep.mubr.f32.mxu0 0.0
        %667 = vmatmul.mubr.f32.gmra.mrb[0].mxu0 %v578
        %v668 = vpop.f32.mrb[0].mxu0
        %v669 = vadd.f32 0.0, %v668
        %v670 = vpop.f32.mrb[0].mxu0
        %671 = vmatprep.mubr.f32.mxu0 0.0
        %672 = vmatmul.mubr.f32.gmra.mrb[0].mxu0 %v579
        %v673 = vpop.f32.mrb[0].mxu0
        %v674 = vadd.f32 0.0, %v673
        %v675 = vpop.f32.mrb[0].mxu0
        %676 = vmatprep.mubr.f32.mxu0 0.0
        %677 = vmatmul.mubr.f32.gmra.mrb[0].mxu0 %v580
        %v678 = vpop.f32.mrb[0].mxu0
        %v679 = vadd.f32 0.0, %v678
        %v680 = vpop.f32.mrb[0].mxu0
        %681 = vmatprep.mubr.f32.mxu0 0.0
        %682 = vmatmul.mubr.f32.gmra.mrb[0].mxu0 %v581
        %v683 = vpop.f32.mrb[0].mxu0
        %v684 = vadd.f32 0.0, %v683
        %v685 = vpop.f32.mrb[0].mxu0
        %686 = vdwg.mxu0
        %vm687 = vcmask 261120
        %v689 = vsel %vm687, %v582, 0
        %v692 = vsel %vm687, %v583, 0
        %v695 = vsel %vm687, %v584, 0
        %v698 = vsel %vm687, %v585, 0
        %700 = vmatprep.subr.mxu0 0.0
        %701 = vmatpush1.msra.mxu0 %v669
        %702 = vmatprep.subr.mxu0 0.0
        %703 = vmatpush1.msra.mxu0 %v674
        %704 = vmatprep.subr.mxu0 0.0
        %705 = vmatpush1.msra.mxu0 %v679
        %706 = vmatprep.subr.mxu0 0.0
        %707 = vmatpush1.msra.mxu0 %v684
        %708 = vmatprep.subr.mxu0 0.0
        %709 = vmatpush1.msra.mxu0 0.0
        %710 = vmatprep.subr.mxu0 0.0
        %711 = vmatpush1.msra.mxu0 0.0
        %712 = vmatprep.subr.mxu0 0.0
        %713 = vmatpush1.msra.mxu0 0.0
        %714 = vmatprep.subr.mxu0 0.0
        %715 = vmatpush1.msra.mxu0 0.0
        %716 = vmatprep.subr.mxu0 0.0
        %717 = vmatpush1.msra.mxu0 0.0
        %718 = vmatprep.subr.mxu0 0.0
        %719 = vmatpush1.msra.mxu0 0.0
        %720 = vmatprep.subr.mxu0 0.0
        %721 = vmatpush1.msra.mxu0 0.0
        %722 = vmatprep.subr.mxu0 0.0
        %723 = vmatpush1.msra.mxu0 0.0
        %724 = vmatprep.subr.mxu0 0.0
        %725 = vmatpush1.msra.mxu0 0.0
        %726 = vmatprep.subr.mxu0 0.0
        %727 = vmatpush1.msra.mxu0 0.0
        %728 = vmatprep.subr.mxu0 0.0
        %729 = vmatpush1.msra.mxu0 0.0
        %730 = vmatprep.subr.mxu0 0.0
        %731 = vmatpush1.msra.mxu0 0.0
        %732 = vmatprep.subr.mxu0 0.0
        %733 = vmatpush1.msra.mxu0 0.0
        %734 = vmatprep.subr.mxu0 0.0
        %735 = vmatpush1.msra.mxu0 0.0
        %736 = vmatprep.subr.mxu0 0.0
        %737 = vmatpush1.msra.mxu0 0.0
        %738 = vmatprep.subr.mxu0 0.0
        %739 = vmatpush1.msra.mxu0 0.0
        %740 = vmatprep.subr.mxu0 0.0
        %741 = vmatpush1.msra.mxu0 0.0
        %742 = vmatprep.subr.mxu0 0.0
        %743 = vmatpush1.msra.mxu0 0.0
        %744 = vmatprep.subr.mxu0 0.0
        %745 = vmatpush1.msra.mxu0 0.0
        %746 = vmatprep.subr.mxu0 0.0
        %747 = vmatpush1.msra.mxu0 0.0
        %748 = vmatprep.subr.mxu0 0.0
        %749 = vmatpush1.msra.mxu0 0.0
        %750 = vmatprep.subr.mxu0 0.0
        %751 = vmatpush1.msra.mxu0 0.0
        %752 = vmatprep.subr.mxu0 0.0
        %753 = vmatpush1.msra.mxu0 0.0
        %754 = vmatprep.subr.mxu0 0.0
        %755 = vmatpush1.msra.mxu0 0.0
        %756 = vmatprep.subr.mxu0 0.0
        %757 = vmatpush1.msra.mxu0 0.0
        %758 = vmatprep.subr.mxu0 0.0
        %759 = vmatpush1.msra.mxu0 0.0
        %760 = vmatprep.subr.mxu0 0.0
        %761 = vmatpush1.msra.mxu0 0.0
        %762 = vmatprep.subr.mxu0 0.0
        %763 = vmatpush1.msra.mxu0 0.0
        %764 = vmatprep.mubr.f32.mxu0 0.0
        %765 = vmatmul.mubr.f32.gmra.mrb[0].mxu0 %v689
        %v766 = vpop.f32.mrb[0].mxu0
        %v767 = vadd.f32 0.0, %v766
        %v768 = vpop.f32.mrb[0].mxu0
        %769 = vmatprep.mubr.f32.mxu0 0.0
        %770 = vmatmul.mubr.f32.gmra.mrb[0].mxu0 %v692
        %v771 = vpop.f32.mrb[0].mxu0
        %v772 = vadd.f32 0.0, %v771
        %v773 = vpop.f32.mrb[0].mxu0
        %774 = vmatprep.mubr.f32.mxu0 0.0
        %775 = vmatmul.mubr.f32.gmra.mrb[0].mxu0 %v695
        %v776 = vpop.f32.mrb[0].mxu0
        %v777 = vadd.f32 0.0, %v776
        %v778 = vpop.f32.mrb[0].mxu0
        %779 = vmatprep.mubr.f32.mxu0 0.0
        %780 = vmatmul.mubr.f32.gmra.mrb[0].mxu0 %v698
        %v781 = vpop.f32.mrb[0].mxu0
        %v782 = vadd.f32 0.0, %v781
        %v783 = vpop.f32.mrb[0].mxu0
        %784 = vdwg.mxu0
        %v785 = vmax.f32 %v767, 0.0
        %v786 = vmax.f32 %v772, 0.0
        %v787 = vmax.f32 %v777, 0.0
        %v788 = vmax.f32 %v782, 0.0
        %s789 = scalar_lea.vmem %s393, 128 [#allocation6]
        %v790 = vld [vmem:[%s789] sm:$0xff]
        %v791 = vld [vmem:[%s789 + $0x8] sm:$0xff]
        %v792 = vld [vmem:[%s789 + $0x10] sm:$0xff]
        %v793 = vld [vmem:[%s789 + $0x18] sm:$0xff]
        %v794 = vld [vmem:[%s789 + $0x20] sm:$0xff]
        %v795 = vld [vmem:[%s789 + $0x28] sm:$0xff]
        %v796 = vld [vmem:[%s789 + $0x30] sm:$0xff]
        %v797 = vld [vmem:[%s789 + $0x38] sm:$0xff]
        %v798 = vld [vmem:[%s789 + $0x40] sm:$0xff]
        %v799 = vld [vmem:[%s789 + $0x48] sm:$0xff]
        %v800 = vld [vmem:[%s789 + $0x50] sm:$0xff]
        %v801 = vld [vmem:[%s789 + $0x58] sm:$0xff]
        %v802 = vld [vmem:[%s789 + $0x60] sm:$0xff]
        %v803 = vld [vmem:[%s789 + $0x68] sm:$0xff]
        %v804 = vld [vmem:[%s789 + $0x70] sm:$0xff]
        %v805 = vld [vmem:[%s789 + $0x78] sm:$0xff]
        %806 = vmatprep.subr.mxu0 0.0
        %807 = vmatpush1.msra.mxu0 %v790
        %808 = vmatprep.subr.mxu0 0.0
        %809 = vmatpush1.msra.mxu0 %v791
        %810 = vmatprep.subr.mxu0 0.0
        %811 = vmatpush1.msra.mxu0 %v792
        %812 = vmatprep.subr.mxu0 0.0
        %813 = vmatpush1.msra.mxu0 %v793
        %814 = vmatprep.subr.mxu0 0.0
        %815 = vmatpush1.msra.mxu0 %v794
        %816 = vmatprep.subr.mxu0 0.0
        %817 = vmatpush1.msra.mxu0 %v795
        %818 = vmatprep.subr.mxu0 0.0
        %819 = vmatpush1.msra.mxu0 %v796
        %820 = vmatprep.subr.mxu0 0.0
        %821 = vmatpush1.msra.mxu0 %v797
        %822 = vmatprep.subr.mxu0 0.0
        %823 = vmatpush1.msra.mxu0 %v798
        %824 = vmatprep.subr.mxu0 0.0
        %825 = vmatpush1.msra.mxu0 %v799
        %826 = vmatprep.subr.mxu0 0.0
        %827 = vmatpush1.msra.mxu0 %v800
        %828 = vmatprep.subr.mxu0 0.0
        %829 = vmatpush1.msra.mxu0 %v801
        %830 = vmatprep.subr.mxu0 0.0
        %831 = vmatpush1.msra.mxu0 %v802
        %832 = vmatprep.subr.mxu0 0.0
        %833 = vmatpush1.msra.mxu0 %v803
        %834 = vmatprep.subr.mxu0 0.0
        %835 = vmatpush1.msra.mxu0 %v804
        %836 = vmatprep.subr.mxu0 0.0
        %837 = vmatpush1.msra.mxu0 %v805
        %838 = vmatprep.subr.mxu0 0.0
        %839 = vmatpush1.msra.mxu0 0.0
        %840 = vmatprep.subr.mxu0 0.0
        %841 = vmatpush1.msra.mxu0 0.0
        %842 = vmatprep.subr.mxu0 0.0
        %843 = vmatpush1.msra.mxu0 0.0
        %844 = vmatprep.subr.mxu0 0.0
        %845 = vmatpush1.msra.mxu0 0.0
        %846 = vmatprep.subr.mxu0 0.0
        %847 = vmatpush1.msra.mxu0 0.0
        %848 = vmatprep.subr.mxu0 0.0
        %849 = vmatpush1.msra.mxu0 0.0
        %850 = vmatprep.subr.mxu0 0.0
        %851 = vmatpush1.msra.mxu0 0.0
        %852 = vmatprep.subr.mxu0 0.0
        %853 = vmatpush1.msra.mxu0 0.0
        %854 = vmatprep.subr.mxu0 0.0
        %855 = vmatpush1.msra.mxu0 0.0
        %856 = vmatprep.subr.mxu0 0.0
        %857 = vmatpush1.msra.mxu0 0.0
        %858 = vmatprep.subr.mxu0 0.0
        %859 = vmatpush1.msra.mxu0 0.0
        %860 = vmatprep.subr.mxu0 0.0
        %861 = vmatpush1.msra.mxu0 0.0
        %862 = vmatprep.subr.mxu0 0.0
        %863 = vmatpush1.msra.mxu0 0.0
        %864 = vmatprep.subr.mxu0 0.0
        %865 = vmatpush1.msra.mxu0 0.0
        %866 = vmatprep.subr.mxu0 0.0
        %867 = vmatpush1.msra.mxu0 0.0
        %868 = vmatprep.subr.mxu0 0.0
        %869 = vmatpush1.msra.mxu0 0.0
        %870 = vmatprep.mubr.f32.mxu0 0.0
        %871 = vmatmul.mubr.f32.gmra.mrb[0].mxu0 %v785
        %v872 = vpop.f32.mrb[0].mxu0
        %v873 = vadd.f32 0.0, %v872
        %v874 = vpop.f32.mrb[0].mxu0
        %875 = vmatprep.mubr.f32.mxu0 0.0
        %876 = vmatmul.mubr.f32.gmra.mrb[0].mxu0 %v786
        %v877 = vpop.f32.mrb[0].mxu0
        %v878 = vadd.f32 0.0, %v877
        %v879 = vpop.f32.mrb[0].mxu0
        %880 = vmatprep.mubr.f32.mxu0 0.0
        %881 = vmatmul.mubr.f32.gmra.mrb[0].mxu0 %v787
        %v882 = vpop.f32.mrb[0].mxu0
        %v883 = vadd.f32 0.0, %v882
        %v884 = vpop.f32.mrb[0].mxu0
        %885 = vmatprep.mubr.f32.mxu0 0.0
        %886 = vmatmul.mubr.f32.gmra.mrb[0].mxu0 %v788
        %v887 = vpop.f32.mrb[0].mxu0
        %v888 = vadd.f32 0.0, %v887
        %v889 = vpop.f32.mrb[0].mxu0
        %890 = vdwg.mxu0
        %891 = vmatprep.subr.mxu0 0.0
        %892 = vmatpush1.msra.mxu0 %v873
        %893 = vmatprep.subr.mxu0 0.0
        %894 = vmatpush1.msra.mxu0 %v878
        %895 = vmatprep.subr.mxu0 0.0
        %896 = vmatpush1.msra.mxu0 %v883
        %897 = vmatprep.subr.mxu0 0.0
        %898 = vmatpush1.msra.mxu0 %v888
        %899 = vmatprep.subr.mxu0 0.0
        %900 = vmatpush1.msra.mxu0 0.0
        %901 = vmatprep.subr.mxu0 0.0
        %902 = vmatpush1.msra.mxu0 0.0
        %903 = vmatprep.subr.mxu0 0.0
        %904 = vmatpush1.msra.mxu0 0.0
        %905 = vmatprep.subr.mxu0 0.0
        %906 = vmatpush1.msra.mxu0 0.0
        %907 = vmatprep.subr.mxu0 0.0
        %908 = vmatpush1.msra.mxu0 0.0
        %909 = vmatprep.subr.mxu0 0.0
        %910 = vmatpush1.msra.mxu0 0.0
        %911 = vmatprep.subr.mxu0 0.0
        %912 = vmatpush1.msra.mxu0 0.0
        %913 = vmatprep.subr.mxu0 0.0
        %914 = vmatpush1.msra.mxu0 0.0
        %915 = vmatprep.subr.mxu0 0.0
        %916 = vmatpush1.msra.mxu0 0.0
        %917 = vmatprep.subr.mxu0 0.0
        %918 = vmatpush1.msra.mxu0 0.0
        %919 = vmatprep.subr.mxu0 0.0
        %920 = vmatpush1.msra.mxu0 0.0
        %921 = vmatprep.subr.mxu0 0.0
        %922 = vmatpush1.msra.mxu0 0.0
        %923 = vmatprep.subr.mxu0 0.0
        %924 = vmatpush1.msra.mxu0 0.0
        %925 = vmatprep.subr.mxu0 0.0
        %926 = vmatpush1.msra.mxu0 0.0
        %927 = vmatprep.subr.mxu0 0.0
        %928 = vmatpush1.msra.mxu0 0.0
        %929 = vmatprep.subr.mxu0 0.0
        %930 = vmatpush1.msra.mxu0 0.0
        %931 = vmatprep.subr.mxu0 0.0
        %932 = vmatpush1.msra.mxu0 0.0
        %933 = vmatprep.subr.mxu0 0.0
        %934 = vmatpush1.msra.mxu0 0.0
        %935 = vmatprep.subr.mxu0 0.0
        %936 = vmatpush1.msra.mxu0 0.0
        %937 = vmatprep.subr.mxu0 0.0
        %938 = vmatpush1.msra.mxu0 0.0
        %939 = vmatprep.subr.mxu0 0.0
        %940 = vmatpush1.msra.mxu0 0.0
        %941 = vmatprep.subr.mxu0 0.0
        %942 = vmatpush1.msra.mxu0 0.0
        %943 = vmatprep.subr.mxu0 0.0
        %944 = vmatpush1.msra.mxu0 0.0
        %945 = vmatprep.subr.mxu0 0.0
        %946 = vmatpush1.msra.mxu0 0.0
        %947 = vmatprep.subr.mxu0 0.0
        %948 = vmatpush1.msra.mxu0 0.0
        %949 = vmatprep.subr.mxu0 0.0
        %950 = vmatpush1.msra.mxu0 0.0
        %951 = vmatprep.subr.mxu0 0.0
        %952 = vmatpush1.msra.mxu0 0.0
        %953 = vmatprep.subr.mxu0 0.0
        %954 = vmatpush1.msra.mxu0 0.0
        %955 = vmatprep.mubr.f32.mxu0 0.0
        %956 = vmatmul.mubr.f32.gmra.mrb[0].mxu0 %v689
        %v957 = vpop.f32.mrb[0].mxu0
        %v958 = vadd.f32 0.0, %v957
        %v959 = vpop.f32.mrb[0].mxu0
        %960 = vmatprep.mubr.f32.mxu0 0.0
        %961 = vmatmul.mubr.f32.gmra.mrb[0].mxu0 %v692
        %v962 = vpop.f32.mrb[0].mxu0
        %v963 = vadd.f32 0.0, %v962
        %v964 = vpop.f32.mrb[0].mxu0
        %965 = vmatprep.mubr.f32.mxu0 0.0
        %966 = vmatmul.mubr.f32.gmra.mrb[0].mxu0 %v695
        %v967 = vpop.f32.mrb[0].mxu0
        %v968 = vadd.f32 0.0, %v967
        %v969 = vpop.f32.mrb[0].mxu0
        %970 = vmatprep.mubr.f32.mxu0 0.0
        %971 = vmatmul.mubr.f32.gmra.mrb[0].mxu0 %v698
        %v972 = vpop.f32.mrb[0].mxu0
        %v973 = vadd.f32 0.0, %v972
        %v974 = vpop.f32.mrb[0].mxu0
        %975 = vdwg.mxu0
        %v976 = vmax.f32 %v958, 0.0
        %v977 = vmax.f32 %v963, 0.0
        %v978 = vmax.f32 %v968, 0.0
        %v979 = vmax.f32 %v973, 0.0
        %s980 = scalar_lea.vmem %s393, 256 [#allocation6]
        %v981 = vld [vmem:[%s980] sm:$0xff]
        %v982 = vld [vmem:[%s980 + $0x8] sm:$0xff]
        %v983 = vld [vmem:[%s980 + $0x10] sm:$0xff]
        %v984 = vld [vmem:[%s980 + $0x18] sm:$0xff]
        %v985 = vld [vmem:[%s980 + $0x20] sm:$0xff]
        %v986 = vld [vmem:[%s980 + $0x28] sm:$0xff]
        %v987 = vld [vmem:[%s980 + $0x30] sm:$0xff]
        %v988 = vld [vmem:[%s980 + $0x38] sm:$0xff]
        %v989 = vld [vmem:[%s980 + $0x40] sm:$0xff]
        %v990 = vld [vmem:[%s980 + $0x48] sm:$0xff]
        %v991 = vld [vmem:[%s980 + $0x50] sm:$0xff]
        %v992 = vld [vmem:[%s980 + $0x58] sm:$0xff]
        %v993 = vld [vmem:[%s980 + $0x60] sm:$0xff]
        %v994 = vld [vmem:[%s980 + $0x68] sm:$0xff]
        %v995 = vld [vmem:[%s980 + $0x70] sm:$0xff]
        %v996 = vld [vmem:[%s980 + $0x78] sm:$0xff]
        %997 = vmatprep.subr.mxu0 0.0
        %998 = vmatpush1.msra.mxu0 %v981
        %999 = vmatprep.subr.mxu0 0.0
        %1000 = vmatpush1.msra.mxu0 %v982
        %1001 = vmatprep.subr.mxu0 0.0
        %1002 = vmatpush1.msra.mxu0 %v983
        %1003 = vmatprep.subr.mxu0 0.0
        %1004 = vmatpush1.msra.mxu0 %v984
        %1005 = vmatprep.subr.mxu0 0.0
        %1006 = vmatpush1.msra.mxu0 %v985
        %1007 = vmatprep.subr.mxu0 0.0
        %1008 = vmatpush1.msra.mxu0 %v986
        %1009 = vmatprep.subr.mxu0 0.0
        %1010 = vmatpush1.msra.mxu0 %v987
        %1011 = vmatprep.subr.mxu0 0.0
        %1012 = vmatpush1.msra.mxu0 %v988
        %1013 = vmatprep.subr.mxu0 0.0
        %1014 = vmatpush1.msra.mxu0 %v989
        %1015 = vmatprep.subr.mxu0 0.0
        %1016 = vmatpush1.msra.mxu0 %v990
        %1017 = vmatprep.subr.mxu0 0.0
        %1018 = vmatpush1.msra.mxu0 %v991
        %1019 = vmatprep.subr.mxu0 0.0
        %1020 = vmatpush1.msra.mxu0 %v992
        %1021 = vmatprep.subr.mxu0 0.0
        %1022 = vmatpush1.msra.mxu0 %v993
        %1023 = vmatprep.subr.mxu0 0.0
        %1024 = vmatpush1.msra.mxu0 %v994
        %1025 = vmatprep.subr.mxu0 0.0
        %1026 = vmatpush1.msra.mxu0 %v995
        %1027 = vmatprep.subr.mxu0 0.0
        %1028 = vmatpush1.msra.mxu0 %v996
        %1029 = vmatprep.subr.mxu0 0.0
        %1030 = vmatpush1.msra.mxu0 0.0
        %1031 = vmatprep.subr.mxu0 0.0
        %1032 = vmatpush1.msra.mxu0 0.0
        %1033 = vmatprep.subr.mxu0 0.0
        %1034 = vmatpush1.msra.mxu0 0.0
        %1035 = vmatprep.subr.mxu0 0.0
        %1036 = vmatpush1.msra.mxu0 0.0
        %1037 = vmatprep.subr.mxu0 0.0
        %1038 = vmatpush1.msra.mxu0 0.0
        %1039 = vmatprep.subr.mxu0 0.0
        %1040 = vmatpush1.msra.mxu0 0.0
        %1041 = vmatprep.subr.mxu0 0.0
        %1042 = vmatpush1.msra.mxu0 0.0
        %1043 = vmatprep.subr.mxu0 0.0
        %1044 = vmatpush1.msra.mxu0 0.0
        %1045 = vmatprep.subr.mxu0 0.0
        %1046 = vmatpush1.msra.mxu0 0.0
        %1047 = vmatprep.subr.mxu0 0.0
        %1048 = vmatpush1.msra.mxu0 0.0
        %1049 = vmatprep.subr.mxu0 0.0
        %1050 = vmatpush1.msra.mxu0 0.0
        %1051 = vmatprep.subr.mxu0 0.0
        %1052 = vmatpush1.msra.mxu0 0.0
        %1053 = vmatprep.subr.mxu0 0.0
        %1054 = vmatpush1.msra.mxu0 0.0
        %1055 = vmatprep.subr.mxu0 0.0
        %1056 = vmatpush1.msra.mxu0 0.0
        %1057 = vmatprep.subr.mxu0 0.0
        %1058 = vmatpush1.msra.mxu0 0.0
        %1059 = vmatprep.subr.mxu0 0.0
        %1060 = vmatpush1.msra.mxu0 0.0
        %1061 = vmatprep.mubr.f32.mxu0 0.0
        %1062 = vmatmul.mubr.f32.gmra.mrb[0].mxu0 %v976
        %v1063 = vpop.f32.mrb[0].mxu0
        %v1064 = vadd.f32 0.0, %v1063
        %v1065 = vpop.f32.mrb[0].mxu0
        %1066 = vmatprep.mubr.f32.mxu0 0.0
        %1067 = vmatmul.mubr.f32.gmra.mrb[0].mxu0 %v977
        %v1068 = vpop.f32.mrb[0].mxu0
        %v1069 = vadd.f32 0.0, %v1068
        %v1070 = vpop.f32.mrb[0].mxu0
        %1071 = vmatprep.mubr.f32.mxu0 0.0
        %1072 = vmatmul.mubr.f32.gmra.mrb[0].mxu0 %v978
        %v1073 = vpop.f32.mrb[0].mxu0
        %v1074 = vadd.f32 0.0, %v1073
        %v1075 = vpop.f32.mrb[0].mxu0
        %1076 = vmatprep.mubr.f32.mxu0 0.0
        %1077 = vmatmul.mubr.f32.gmra.mrb[0].mxu0 %v979
        %v1078 = vpop.f32.mrb[0].mxu0
        %v1079 = vadd.f32 0.0, %v1078
        %v1080 = vpop.f32.mrb[0].mxu0
        %1081 = vdwg.mxu0
        %1082 = vmatprep.subr.mxu0 0.0
        %1083 = vmatpush1.msra.mxu0 %v1064
        %1084 = vmatprep.subr.mxu0 0.0
        %1085 = vmatpush1.msra.mxu0 %v1069
        %1086 = vmatprep.subr.mxu0 0.0
        %1087 = vmatpush1.msra.mxu0 %v1074
        %1088 = vmatprep.subr.mxu0 0.0
        %1089 = vmatpush1.msra.mxu0 %v1079
        %1090 = vmatprep.subr.mxu0 0.0
        %1091 = vmatpush1.msra.mxu0 0.0
        %1092 = vmatprep.subr.mxu0 0.0
        %1093 = vmatpush1.msra.mxu0 0.0
        %1094 = vmatprep.subr.mxu0 0.0
        %1095 = vmatpush1.msra.mxu0 0.0
        %1096 = vmatprep.subr.mxu0 0.0
        %1097 = vmatpush1.msra.mxu0 0.0
        %1098 = vmatprep.subr.mxu0 0.0
        %1099 = vmatpush1.msra.mxu0 0.0
        %1100 = vmatprep.subr.mxu0 0.0
        %1101 = vmatpush1.msra.mxu0 0.0
        %1102 = vmatprep.subr.mxu0 0.0
        %1103 = vmatpush1.msra.mxu0 0.0
        %1104 = vmatprep.subr.mxu0 0.0
        %1105 = vmatpush1.msra.mxu0 0.0
        %1106 = vmatprep.subr.mxu0 0.0
        %1107 = vmatpush1.msra.mxu0 0.0
        %1108 = vmatprep.subr.mxu0 0.0
        %1109 = vmatpush1.msra.mxu0 0.0
        %1110 = vmatprep.subr.mxu0 0.0
        %1111 = vmatpush1.msra.mxu0 0.0
        %1112 = vmatprep.subr.mxu0 0.0
        %1113 = vmatpush1.msra.mxu0 0.0
        %1114 = vmatprep.subr.mxu0 0.0
        %1115 = vmatpush1.msra.mxu0 0.0
        %1116 = vmatprep.subr.mxu0 0.0
        %1117 = vmatpush1.msra.mxu0 0.0
        %1118 = vmatprep.subr.mxu0 0.0
        %1119 = vmatpush1.msra.mxu0 0.0
        %1120 = vmatprep.subr.mxu0 0.0
        %1121 = vmatpush1.msra.mxu0 0.0
        %1122 = vmatprep.subr.mxu0 0.0
        %1123 = vmatpush1.msra.mxu0 0.0
        %1124 = vmatprep.subr.mxu0 0.0
        %1125 = vmatpush1.msra.mxu0 0.0
        %1126 = vmatprep.subr.mxu0 0.0
        %1127 = vmatpush1.msra.mxu0 0.0
        %1128 = vmatprep.subr.mxu0 0.0
        %1129 = vmatpush1.msra.mxu0 0.0
        %1130 = vmatprep.subr.mxu0 0.0
        %1131 = vmatpush1.msra.mxu0 0.0
        %1132 = vmatprep.subr.mxu0 0.0
        %1133 = vmatpush1.msra.mxu0 0.0
        %1134 = vmatprep.subr.mxu0 0.0
        %1135 = vmatpush1.msra.mxu0 0.0
        %1136 = vmatprep.subr.mxu0 0.0
        %1137 = vmatpush1.msra.mxu0 0.0
        %1138 = vmatprep.subr.mxu0 0.0
        %1139 = vmatpush1.msra.mxu0 0.0
        %1140 = vmatprep.subr.mxu0 0.0
        %1141 = vmatpush1.msra.mxu0 0.0
        %1142 = vmatprep.subr.mxu0 0.0
        %1143 = vmatpush1.msra.mxu0 0.0
        %1144 = vmatprep.subr.mxu0 0.0
        %1145 = vmatpush1.msra.mxu0 0.0
        %1146 = vmatprep.mubr.f32.mxu0 0.0
        %1147 = vmatmul.mubr.f32.gmra.mrb[0].mxu0 %v689
        %v1148 = vpop.f32.mrb[0].mxu0
        %v1149 = vadd.f32 0.0, %v1148
        %v1150 = vpop.f32.mrb[0].mxu0
        %1151 = vmatprep.mubr.f32.mxu0 0.0
        %1152 = vmatmul.mubr.f32.gmra.mrb[0].mxu0 %v692
        %v1153 = vpop.f32.mrb[0].mxu0
        %v1154 = vadd.f32 0.0, %v1153
        %v1155 = vpop.f32.mrb[0].mxu0
        %1156 = vmatprep.mubr.f32.mxu0 0.0
        %1157 = vmatmul.mubr.f32.gmra.mrb[0].mxu0 %v695
        %v1158 = vpop.f32.mrb[0].mxu0
        %v1159 = vadd.f32 0.0, %v1158
        %v1160 = vpop.f32.mrb[0].mxu0
        %1161 = vmatprep.mubr.f32.mxu0 0.0
        %1162 = vmatmul.mubr.f32.gmra.mrb[0].mxu0 %v698
        %v1163 = vpop.f32.mrb[0].mxu0
        %v1164 = vadd.f32 0.0, %v1163
        %v1165 = vpop.f32.mrb[0].mxu0
        %1166 = vdwg.mxu0
        %v1167 = vmax.f32 %v1149, 0.0
        %v1168 = vmax.f32 %v1154, 0.0
        %v1169 = vmax.f32 %v1159, 0.0
        %v1170 = vmax.f32 %v1164, 0.0
        %v1171 = vld [vmem:[%s5] sm:$0xff]
        %v1173 = vsel %vm687, %v1171, 0
        %1175 = vmatprep.subr.mxu0 0.0
        %1176 = vmatpush1.msra.mxu0 %v1167
        %1177 = vmatprep.subr.mxu0 0.0
        %1178 = vmatpush1.msra.mxu0 %v1168
        %1179 = vmatprep.subr.mxu0 0.0
        %1180 = vmatpush1.msra.mxu0 %v1169
        %1181 = vmatprep.subr.mxu0 0.0
        %1182 = vmatpush1.msra.mxu0 %v1170
        %1183 = vmatprep.subr.mxu0 0.0
        %1184 = vmatpush1.msra.mxu0 0.0
        %1185 = vmatprep.subr.mxu0 0.0
        %1186 = vmatpush1.msra.mxu0 0.0
        %1187 = vmatprep.subr.mxu0 0.0
        %1188 = vmatpush1.msra.mxu0 0.0
        %1189 = vmatprep.subr.mxu0 0.0
        %1190 = vmatpush1.msra.mxu0 0.0
        %1191 = vmatprep.subr.mxu0 0.0
        %1192 = vmatpush1.msra.mxu0 0.0
        %1193 = vmatprep.subr.mxu0 0.0
        %1194 = vmatpush1.msra.mxu0 0.0
        %1195 = vmatprep.subr.mxu0 0.0
        %1196 = vmatpush1.msra.mxu0 0.0
        %1197 = vmatprep.subr.mxu0 0.0
        %1198 = vmatpush1.msra.mxu0 0.0
        %1199 = vmatprep.subr.mxu0 0.0
        %1200 = vmatpush1.msra.mxu0 0.0
        %1201 = vmatprep.subr.mxu0 0.0
        %1202 = vmatpush1.msra.mxu0 0.0
        %1203 = vmatprep.subr.mxu0 0.0
        %1204 = vmatpush1.msra.mxu0 0.0
        %1205 = vmatprep.subr.mxu0 0.0
        %1206 = vmatpush1.msra.mxu0 0.0
        %1207 = vmatprep.subr.mxu0 0.0
        %1208 = vmatpush1.msra.mxu0 0.0
        %1209 = vmatprep.subr.mxu0 0.0
        %1210 = vmatpush1.msra.mxu0 0.0
        %1211 = vmatprep.subr.mxu0 0.0
        %1212 = vmatpush1.msra.mxu0 0.0
        %1213 = vmatprep.subr.mxu0 0.0
        %1214 = vmatpush1.msra.mxu0 0.0
        %1215 = vmatprep.subr.mxu0 0.0
        %1216 = vmatpush1.msra.mxu0 0.0
        %1217 = vmatprep.subr.mxu0 0.0
        %1218 = vmatpush1.msra.mxu0 0.0
        %1219 = vmatprep.subr.mxu0 0.0
        %1220 = vmatpush1.msra.mxu0 0.0
        %1221 = vmatprep.subr.mxu0 0.0
        %1222 = vmatpush1.msra.mxu0 0.0
        %1223 = vmatprep.subr.mxu0 0.0
        %1224 = vmatpush1.msra.mxu0 0.0
        %1225 = vmatprep.subr.mxu0 0.0
        %1226 = vmatpush1.msra.mxu0 0.0
        %1227 = vmatprep.subr.mxu0 0.0
        %1228 = vmatpush1.msra.mxu0 0.0
        %1229 = vmatprep.subr.mxu0 0.0
        %1230 = vmatpush1.msra.mxu0 0.0
        %1231 = vmatprep.subr.mxu0 0.0
        %1232 = vmatpush1.msra.mxu0 0.0
        %1233 = vmatprep.subr.mxu0 0.0
        %1234 = vmatpush1.msra.mxu0 0.0
        %1235 = vmatprep.subr.mxu0 0.0
        %1236 = vmatpush1.msra.mxu0 0.0
        %1237 = vmatprep.subr.mxu0 0.0
        %1238 = vmatpush1.msra.mxu0 0.0
        %1239 = vmatprep.mubr.f32.mxu0 0.0
        %1240 = vmatmul.mubr.f32.gmra.mrb[0].mxu0 %v1173
        %v1241 = vpop.f32.mrb[0].mxu0
        %v1242 = vadd.f32 0.0, %v1241
        %v1243 = vpop.f32.mrb[0].mxu0
        %1244 = vdwg.mxu0
        %v1245 = vld [vmem:[#allocation3] sm:$0xff]
        %v1246 = vld [vmem:[%s402] sm:$0xff]
        %v1247 = vld [vmem:[%s402 + $0x8] sm:$0xff]
        %v1248 = vld [vmem:[%s402 + $0x10] sm:$0xff]
        %v1249 = vld [vmem:[%s402 + $0x18] sm:$0xff]
        %v1250 = vld [vmem:[%s402 + $0x20] sm:$0xff]
        %v1251 = vld [vmem:[%s402 + $0x28] sm:$0xff]
        %v1252 = vld [vmem:[%s402 + $0x30] sm:$0xff]
        %v1253 = vld [vmem:[%s402 + $0x38] sm:$0xff]
        %v1254 = vld [vmem:[%s402 + $0x40] sm:$0xff]
        %v1255 = vld [vmem:[%s402 + $0x48] sm:$0xff]
        %v1256 = vld [vmem:[%s402 + $0x50] sm:$0xff]
        %v1257 = vld [vmem:[%s402 + $0x58] sm:$0xff]
        %v1258 = vld [vmem:[%s402 + $0x60] sm:$0xff]
        %v1259 = vld [vmem:[%s402 + $0x68] sm:$0xff]
        %v1260 = vld [vmem:[%s402 + $0x70] sm:$0xff]
        %v1261 = vld [vmem:[%s402 + $0x78] sm:$0xff]
        %1262 = vmatprep.subr.mxu0 0.0
        %1263 = vmatpush1.msra.mxu0 %v1246
        %1264 = vmatprep.subr.mxu0 0.0
        %1265 = vmatpush1.msra.mxu0 %v1247
        %1266 = vmatprep.subr.mxu0 0.0
        %1267 = vmatpush1.msra.mxu0 %v1248
        %1268 = vmatprep.subr.mxu0 0.0
        %1269 = vmatpush1.msra.mxu0 %v1249
        %1270 = vmatprep.subr.mxu0 0.0
        %1271 = vmatpush1.msra.mxu0 %v1250
        %1272 = vmatprep.subr.mxu0 0.0
        %1273 = vmatpush1.msra.mxu0 %v1251
        %1274 = vmatprep.subr.mxu0 0.0
        %1275 = vmatpush1.msra.mxu0 %v1252
        %1276 = vmatprep.subr.mxu0 0.0
        %1277 = vmatpush1.msra.mxu0 %v1253
        %1278 = vmatprep.subr.mxu0 0.0
        %1279 = vmatpush1.msra.mxu0 %v1254
        %1280 = vmatprep.subr.mxu0 0.0
        %1281 = vmatpush1.msra.mxu0 %v1255
        %1282 = vmatprep.subr.mxu0 0.0
        %1283 = vmatpush1.msra.mxu0 %v1256
        %1284 = vmatprep.subr.mxu0 0.0
        %1285 = vmatpush1.msra.mxu0 %v1257
        %1286 = vmatprep.subr.mxu0 0.0
        %1287 = vmatpush1.msra.mxu0 %v1258
        %1288 = vmatprep.subr.mxu0 0.0
        %1289 = vmatpush1.msra.mxu0 %v1259
        %1290 = vmatprep.subr.mxu0 0.0
        %1291 = vmatpush1.msra.mxu0 %v1260
        %1292 = vmatprep.subr.mxu0 0.0
        %1293 = vmatpush1.msra.mxu0 %v1261
        %1294 = vmatprep.subr.mxu0 0.0
        %1295 = vmatpush1.msra.mxu0 0.0
        %1296 = vmatprep.subr.mxu0 0.0
        %1297 = vmatpush1.msra.mxu0 0.0
        %1298 = vmatprep.subr.mxu0 0.0
        %1299 = vmatpush1.msra.mxu0 0.0
        %1300 = vmatprep.subr.mxu0 0.0
        %1301 = vmatpush1.msra.mxu0 0.0
        %1302 = vmatprep.subr.mxu0 0.0
        %1303 = vmatpush1.msra.mxu0 0.0
        %1304 = vmatprep.subr.mxu0 0.0
        %1305 = vmatpush1.msra.mxu0 0.0
        %1306 = vmatprep.subr.mxu0 0.0
        %1307 = vmatpush1.msra.mxu0 0.0
        %1308 = vmatprep.subr.mxu0 0.0
        %1309 = vmatpush1.msra.mxu0 0.0
        %1310 = vmatprep.subr.mxu0 0.0
        %1311 = vmatpush1.msra.mxu0 0.0
        %1312 = vmatprep.subr.mxu0 0.0
        %1313 = vmatpush1.msra.mxu0 0.0
        %1314 = vmatprep.subr.mxu0 0.0
        %1315 = vmatpush1.msra.mxu0 0.0
        %1316 = vmatprep.subr.mxu0 0.0
        %1317 = vmatpush1.msra.mxu0 0.0
        %1318 = vmatprep.subr.mxu0 0.0
        %1319 = vmatpush1.msra.mxu0 0.0
        %1320 = vmatprep.subr.mxu0 0.0
        %1321 = vmatpush1.msra.mxu0 0.0
        %1322 = vmatprep.subr.mxu0 0.0
        %1323 = vmatpush1.msra.mxu0 0.0
        %1324 = vmatprep.subr.mxu0 0.0
        %1325 = vmatpush1.msra.mxu0 0.0
        %1326 = vmatprep.mubr.f32.mxu0 0.0
        %1327 = vmatmul.mubr.f32.gmra.mrb[0].mxu0 %v1242
        %v1328 = vpop.f32.mrb[0].mxu0
        %v1329 = vadd.f32 0.0, %v1328
        %v1330 = vpop.f32.mrb[0].mxu0
        %1331 = vdwg.mxu0
        %v1332 = vadd.f32 %v1245, %v1329
        %1333 = vst [vmem:[#allocation3] sm:$0xff] %v1332
        %p1334 = scmp.eq.s32.totalorder %s26, 1
        // Predicated region
        $region81: #{gcn_model_forward.1} parent=59 // pred_check
          %p1335 = pneg %p1334
        $region82: #{gcn_model_forward.1} parent=59 // pred_check_branch
          %1337 = sbr.rel (%p1335) target = $region84
        $region83: #{gcn_model_forward.1} parent=59 // pred_region
          %v1338 = vld [vmem:[#allocation3] sm:$0xff]
          %v1339 = vld [vmem:[%s7] sm:$0x1]
          %v1341 = vlaneseq
          %v1342 = vshrl.u32 %v1341, 7
          %v1343 = vsub.s32 0, %v1342
          %v1344 = vrot.slane %v1339, %v1343
          %v1346 = vadd.f32 %v1338, %v1344
          %v1347 = vmax.f32 %v1346, 0.0
          %v1348 = vld [vmem:[#allocation9] sm:$0xff]
          %v1349 = vld [vmem:[#allocation9 + $0x8] sm:$0xff]
          %v1350 = vld [vmem:[#allocation9 + $0x10] sm:$0xff]
          %v1351 = vld [vmem:[#allocation9 + $0x18] sm:$0xff]
          %v1352 = vld [vmem:[#allocation9 + $0x20] sm:$0xff]
          %v1353 = vld [vmem:[#allocation9 + $0x28] sm:$0xff]
          %v1354 = vld [vmem:[#allocation9 + $0x30] sm:$0xff]
          %v1355 = vld [vmem:[#allocation9 + $0x38] sm:$0xff]
          %v1356 = vld [vmem:[#allocation9 + $0x40] sm:$0xff]
          %v1357 = vld [vmem:[#allocation9 + $0x48] sm:$0xff]
          %v1358 = vld [vmem:[#allocation9 + $0x50] sm:$0xff]
          %v1359 = vld [vmem:[#allocation9 + $0x58] sm:$0xff]
          %v1360 = vld [vmem:[#allocation9 + $0x60] sm:$0xff]
          %v1361 = vld [vmem:[#allocation9 + $0x68] sm:$0xff]
          %v1362 = vld [vmem:[#allocation9 + $0x70] sm:$0xff]
          %v1363 = vld [vmem:[#allocation9 + $0x78] sm:$0xff]
          %v1364 = vld [vmem:[%s9] sm:$0x1]
          %v1366 = vlaneseq
          %v1367 = vshrl.u32 %v1366, 7
          %v1368 = vsub.s32 0, %v1367
          %v1369 = vrot.slane %v1364, %v1368
          %1371 = vmatprep.subr.mxu0 0.0
          %1372 = vmatpush1.msra.mxu0 %v1348
          %1373 = vmatprep.subr.mxu0 0.0
          %1374 = vmatpush1.msra.mxu0 %v1349
          %1375 = vmatprep.subr.mxu0 0.0
          %1376 = vmatpush1.msra.mxu0 %v1350
          %1377 = vmatprep.subr.mxu0 0.0
          %1378 = vmatpush1.msra.mxu0 %v1351
          %1379 = vmatprep.subr.mxu0 0.0
          %1380 = vmatpush1.msra.mxu0 %v1352
          %1381 = vmatprep.subr.mxu0 0.0
          %1382 = vmatpush1.msra.mxu0 %v1353
          %1383 = vmatprep.subr.mxu0 0.0
          %1384 = vmatpush1.msra.mxu0 %v1354
          %1385 = vmatprep.subr.mxu0 0.0
          %1386 = vmatpush1.msra.mxu0 %v1355
          %1387 = vmatprep.subr.mxu0 0.0
          %1388 = vmatpush1.msra.mxu0 %v1356
          %1389 = vmatprep.subr.mxu0 0.0
          %1390 = vmatpush1.msra.mxu0 %v1357
          %1391 = vmatprep.subr.mxu0 0.0
          %1392 = vmatpush1.msra.mxu0 %v1358
          %1393 = vmatprep.subr.mxu0 0.0
          %1394 = vmatpush1.msra.mxu0 %v1359
          %1395 = vmatprep.subr.mxu0 0.0
          %1396 = vmatpush1.msra.mxu0 %v1360
          %1397 = vmatprep.subr.mxu0 0.0
          %1398 = vmatpush1.msra.mxu0 %v1361
          %1399 = vmatprep.subr.mxu0 0.0
          %1400 = vmatpush1.msra.mxu0 %v1362
          %1401 = vmatprep.subr.mxu0 0.0
          %1402 = vmatpush1.msra.mxu0 %v1363
          %1403 = vmatprep.subr.mxu0 0.0
          %1404 = vmatpush1.msra.mxu0 0.0
          %1405 = vmatprep.subr.mxu0 0.0
          %1406 = vmatpush1.msra.mxu0 0.0
          %1407 = vmatprep.subr.mxu0 0.0
          %1408 = vmatpush1.msra.mxu0 0.0
          %1409 = vmatprep.subr.mxu0 0.0
          %1410 = vmatpush1.msra.mxu0 0.0
          %1411 = vmatprep.subr.mxu0 0.0
          %1412 = vmatpush1.msra.mxu0 0.0
          %1413 = vmatprep.subr.mxu0 0.0
          %1414 = vmatpush1.msra.mxu0 0.0
          %1415 = vmatprep.subr.mxu0 0.0
          %1416 = vmatpush1.msra.mxu0 0.0
          %1417 = vmatprep.subr.mxu0 0.0
          %1418 = vmatpush1.msra.mxu0 0.0
          %1419 = vmatprep.subr.mxu0 0.0
          %1420 = vmatpush1.msra.mxu0 0.0
          %1421 = vmatprep.subr.mxu0 0.0
          %1422 = vmatpush1.msra.mxu0 0.0
          %1423 = vmatprep.subr.mxu0 0.0
          %1424 = vmatpush1.msra.mxu0 0.0
          %1425 = vmatprep.subr.mxu0 0.0
          %1426 = vmatpush1.msra.mxu0 0.0
          %1427 = vmatprep.subr.mxu0 0.0
          %1428 = vmatpush1.msra.mxu0 0.0
          %1429 = vmatprep.subr.mxu0 0.0
          %1430 = vmatpush1.msra.mxu0 0.0
          %1431 = vmatprep.subr.mxu0 0.0
          %1432 = vmatpush1.msra.mxu0 0.0
          %1433 = vmatprep.subr.mxu0 0.0
          %1434 = vmatpush1.msra.mxu0 0.0
          %1435 = vmatprep.mubr.f32.mxu0 0.0
          %1436 = vmatmul.mubr.f32.gmra.mrb[0].mxu0 %v1347
          %v1437 = vpop.f32.mrb[0].mxu0
          %v1438 = vadd.f32 %v1369, %v1437
          %v1439 = vpop.f32.mrb[0].mxu0
          %1440 = vdwg.mxu0
          %1441 = vst [vmem:[%s10] sm:$0xff] %v1438
        $region84: #{gcn_model_forward.1} parent=59 // pred_fallthru
          _
        // Predicated region
        $region85: #{gcn_model_forward.1} parent=59 // pred_check
          %p1442 = pneg %p264
        $region86: #{gcn_model_forward.1} parent=59 // pred_check_branch
          %1444 = sbr.rel (%p1442) target = $region88
        $region87: #{gcn_model_forward.1} parent=59 // pred_region
          _
        $region88: #{gcn_model_forward.1} parent=59 // pred_fallthru
          _
        // Predicated region
        $region89: #{gcn_model_forward.1} parent=59 // pred_check
          %p1445 = pneg %p264
        $region90: #{gcn_model_forward.1} parent=59 // pred_check_branch
          %1447 = sbr.rel (%p1445) target = $region92
        $region91: #{gcn_model_forward.1} parent=59 // pred_region
          _
        $region92: #{gcn_model_forward.1} parent=59 // pred_fallthru
          _
      $region60: #{gcn_model_forward.1} parent=5 // pred_fallthru
        _
      %p1448 = scmp.le.s32.totalorder 2, %s21
      // Predicated region
      $region93: #{gcn_model_forward.1} parent=5 // pred_check
        %p1449 = pneg %p1448
      $region94: #{gcn_model_forward.1} parent=5 // pred_check_branch
        %1451 = sbr.rel (%p1449) target = $region96
      $region95: #{gcn_model_forward.1} parent=5 // pred_region
        %s1452 = ssub.s32 %s21, 2
      $region96: #{gcn_model_forward.1} parent=5 // pred_fallthru
        _
    $region6: #{gcn_model_forward.1} parent=1 // loop_footer
      %s25 = sadd.s32 1, %s21
    $region7: #{gcn_model_forward.1} parent=1 // loop_footer_branch
      %20 = sbr.rel target = $region3
    $region8: #{gcn_model_forward.1} parent=1 // loop_exit
      _
    %1453 = vsyncpa [#allocation5], 1
    %s1454 = scalar_lea.sflag [#allocation5], 1
    %1455 = vsyncpa %s1454, 1
    %1456 = vsyncpa [#allocation7], 1
    %s1457 = scalar_lea.sflag [#allocation7], 1
    %1458 = vsyncpa %s1457, 1
    %1459 = vsyncpa [#allocation10], 1

</llo_original>
